<compile_context>
chip_gen: v7x
topology: tpu7x:2x2x1
jax: 0.10.0
libtpu: 0.0.40
codegen_flags: <defaults>
</compile_context>

<pallas_src>
from functools import partial

import jax
import jax.numpy as jnp
import numpy as np
from jax.experimental import pallas as pl
from jax.experimental.pallas import tpu as pltpu


# ----------------------------------------------------------------------------
# Parameter setup (glue, plain JAX)
# ----------------------------------------------------------------------------
def spectral_normalize(weight, n_iter=100):
    """Spectral normalization of a ConvTranspose2d weight (Cin, Cout, KH, KW).

    PyTorch's spectral_norm uses dim=1 for ConvTranspose2d, i.e. the weight is
    viewed as a (Cout, Cin*KH*KW) matrix.
    # TODO(synk): PyTorch runs 1 power iteration per forward with a persistent
    # random `u` buffer; here we use a converged deterministic power iteration.
    """
    cin, cout, kh, kw = weight.shape
    wmat = jnp.transpose(weight, (1, 0, 2, 3)).reshape(cout, -1)
    u0 = jnp.ones((cout,), weight.dtype) / jnp.sqrt(jnp.asarray(cout, weight.dtype))

    def body(_, u):
        v = wmat.T @ u
        v = v / (jnp.linalg.norm(v) + 1e-12)
        u = wmat @ v
        u = u / (jnp.linalg.norm(u) + 1e-12)
        return u

    u = jax.lax.fori_loop(0, n_iter, body, u0)
    v = wmat.T @ u
    v = v / (jnp.linalg.norm(v) + 1e-12)
    sigma = u @ (wmat @ v)
    return weight / sigma


# ----------------------------------------------------------------------------
# Pallas kernel: phase-decomposed ConvTranspose2d(4, stride=2, pad=1)
# ----------------------------------------------------------------------------
def _phase_trconv_kernel(xm_ref, xh0_ref, xh1_ref, w_ref, o_ref, *, TH, W, Cin, Cout):
    # xm_ref : (1, TH, W+2, Cin)  main band of the 1-padded input (rows r*TH ..)
    # xh*_ref: (1, 1,  W+2, Cin)  the two halo rows just below the band
    # w_ref  : (4, 4*Cin, Cout)   per-phase im2col weights, phase = 2*ph + pw
    # o_ref  : (1, TH, W*4*Cout)  lane-dense output slab
    xb = jnp.concatenate([xm_ref[0], xh0_ref[0], xh1_ref[0]], axis=0)  # (TH+2, W+2, Cin)
    w = w_ref[...]                                                     # hoist weight load

    outs = []
    p = 0
    for ph in range(2):
        for pw in range(2):
            # im2col over the 4 taps of this phase -> contraction dim 4*Cin
            taps = [xb[ph + dh:ph + dh + TH, pw + dw:pw + dw + W, :]
                    for dh in range(2) for dw in range(2)]
            patch = jnp.concatenate(taps, axis=-1)                     # (TH, W, 4*Cin)
            outs.append(jax.lax.dot_general(
                patch, w[p],
                dimension_numbers=(((2,), (0,)), ((), ())),
                preferred_element_type=jnp.float32))                   # (TH, W, Cout)
            p += 1

    acc = jnp.concatenate(outs, axis=-1)                               # (TH, W, 4*Cout)
    o_ref[0] = acc.reshape(TH, W * 4 * Cout).astype(o_ref.dtype)       # lane-dense store


# ----------------------------------------------------------------------------
# Wrapper helpers
# ----------------------------------------------------------------------------
def _pick_row_tile(H, W, Cin, Cout, max_row_tile, itemsize=4, vmem_budget=24 << 20):
    """Biggest multiple-of-8 divisor of H (<= max_row_tile) fitting the VMEM budget."""
    def tile_bytes(th):
        band = (th + 2) * (W + 2) * Cin        # concatenated input band copy
        patches = 4 * th * W * 4 * Cin         # unrolled per-phase im2col patches
        pouts = 4 * th * W * Cout              # per-phase f32 accumulators
        slab = th * W * 4 * Cout               # output slab
        # factor ~3 on band/slab covers double-buffered pipeline copies + live value
        return itemsize * (3 * band + patches + pouts + 3 * slab)

    cands = [c for c in range(8, min(max_row_tile, H) + 1, 8) if H % c == 0]
    if not cands:
        return H                               # tiny / irregular H: single tile
    best = cands[0]
    for c in cands:
        if tile_bytes(c) <= vmem_budget:
            best = max(best, c)
    return best


def _compiler_params():
    kwargs = dict(dimension_semantics=("parallel", "parallel"))
    try:  # raise scoped-VMEM limit with headroom for double buffering
        cap = pltpu.get_tpu_info().vmem_capacity_bytes
        kwargs["vmem_limit_bytes"] = int(cap // 2)
    except Exception:
        pass
    return pltpu.CompilerParams(**kwargs)


# ----------------------------------------------------------------------------
# Wrapper
# ----------------------------------------------------------------------------
def trconv2d_pallas(x_nchw, w_sn, *, max_row_tile=32, compute_dtype=None):
    """ConvTranspose2d(kernel=4, stride=2, padding=1, bias=False) via Pallas."""
    N, C, H, W = x_nchw.shape
    Cin, Cout, KH, KW = w_sn.shape
    assert Cin == C and KH == 4 and KW == 4

    itemsize = 2 if compute_dtype == jnp.bfloat16 else 4
    TH = _pick_row_tile(H, W, Cin, Cout, max_row_tile, itemsize=itemsize)
    R = H // TH

    # NCHW -> NHWC; the only padding the phase decomposition needs is 1 pixel.
    x = jnp.transpose(x_nchw, (0, 2, 3, 1))
    xp = jnp.pad(x, ((0, 0), (1, 1), (1, 1), (0, 0)))                  # (N, H+2, W+2, C)

    # Per-phase im2col weights.  Output pixel (2m+ph, 2n+pw) reads
    # x_pad[m+ph+dh, n+pw+dw] with kernel element (3-ph-2*dh, 3-pw-2*dw).
    w_hwio = jnp.transpose(w_sn, (2, 3, 0, 1))                         # (KH, KW, Cin, Cout)
    phase_mats = []
    for ph in range(2):
        for pw in range(2):
            taps = [w_hwio[3 - ph - 2 * dh, 3 - pw - 2 * dw]
                    for dh in range(2) for dw in range(2)]              # each (Cin, Cout)
            phase_mats.append(jnp.concatenate(taps, axis=0))            # (4*Cin, Cout)
    w_packed = jnp.stack(phase_mats, axis=0)                            # (4, 4*Cin, Cout)

    if compute_dtype is not None:  # e.g. jnp.bfloat16 on v6e/v7x
        xp = xp.astype(compute_dtype)
        w_packed = w_packed.astype(compute_dtype)

    lanes = W * 4 * Cout

    # Advisory cost hint for XLA's scheduler around the custom call.
    flops = int(2 * N * H * W * 4 * (4 * Cin) * Cout)
    bytes_accessed = int(itemsize * (N * (H + 2) * (W + 2) * Cin + 16 * Cin * Cout)
                         + 4 * N * H * lanes)
    cost = pl.CostEstimate(flops=flops, transcendentals=0,
                           bytes_accessed=bytes_accessed)

    out = pl.pallas_call(
        partial(_phase_trconv_kernel, TH=TH, W=W, Cin=Cin, Cout=Cout),
        out_shape=jax.ShapeDtypeStruct((N, H, lanes), x.dtype),
        grid=(N, R),
        in_specs=[
            pl.BlockSpec((1, TH, W + 2, Cin), lambda n, r: (n, r, 0, 0)),
            pl.BlockSpec((1, 1, W + 2, Cin), lambda n, r: (n, r * TH + TH, 0, 0)),
            pl.BlockSpec((1, 1, W + 2, Cin), lambda n, r: (n, r * TH + TH + 1, 0, 0)),
            pl.BlockSpec((4, 4 * Cin, Cout), lambda n, r: (0, 0, 0)),
        ],
        out_specs=pl.BlockSpec((1, TH, lanes), lambda n, r: (n, r, 0)),
        compiler_params=_compiler_params(),
        cost_estimate=cost,
    )(xp, xp, xp, w_packed)

    # Un-interleave phases: (N, H, W, ph, pw, Cout) -> (N, 2H, 2W, Cout) -> NCHW
    out = out.reshape(N, H, W, 2, 2, Cout)
    out = jnp.transpose(out, (0, 1, 3, 2, 4, 5)).reshape(N, 2 * H, 2 * W, Cout)
    return jnp.transpose(out, (0, 3, 1, 2))


def upsampling2d_block_trp(x_nchw, weight, *, max_row_tile=32, compute_dtype=None):
    """Upsampling2dBlock(type='Trp', norm_layer=None, nl_layer=None) forward."""
    w_sn = spectral_normalize(weight)
    return trconv2d_pallas(x_nchw, w_sn, max_row_tile=max_row_tile,
                           compute_dtype=compute_dtype)


# ----------------------------------------------------------------------------
# Reference (plain JAX) for sanity checking
# ----------------------------------------------------------------------------
def _reference(x_nchw, w_sn, *, stride=2, padding=1):
    KH = w_sn.shape[2]
    pp = KH - 1 - padding
    w_flip_oihw = jnp.transpose(jnp.flip(w_sn, axis=(2, 3)), (1, 0, 2, 3))
    return jax.lax.conv_general_dilated(
        x_nchw, w_flip_oihw,
        window_strides=(1, 1),
        padding=((pp, pp), (pp, pp)),
        lhs_dilation=(stride, stride),
        dimension_numbers=("NCHW", "OIHW", "NCHW"))


if __name__ == "__main__":
    key = jax.random.PRNGKey(0)
    kx, kw = jax.random.split(key)

    N, in_planes, out_planes, H, W = 2, 4, 4, 16, 16
    x = jax.random.normal(kx, (N, in_planes, H, W), dtype=jnp.float32)
    # ConvTranspose2d weight shape: (in_planes, out_planes, 4, 4), bias=False
    weight = jax.random.normal(kw, (in_planes, out_planes, 4, 4),
                               dtype=jnp.float32) * 0.1

    w_sn = spectral_normalize(weight)
    y_ref = jax.block_until_ready(_reference(x, w_sn))

    # Exercise both the row-tiled path (grid=(N,2)) and single-tile path (grid=(N,1)).
    for tile in (8, 32):
        y = upsampling2d_block_trp(x, weight, max_row_tile=tile)
        y = jax.block_until_ready(y)
        assert y.shape == (N, out_planes, 2 * H, 2 * W), y.shape
        assert np.allclose(np.asarray(y), np.asarray(y_ref), atol=1e-4, rtol=1e-4)

    print("KERNEL_OK")
</pallas_src>

<mosaic_0001>
module attributes {stable_mosaic.version = 11 : i64} {
  func.func @_phase_trconv_kernel(%arg0: i32, %arg1: i32, %arg2: memref<1x8x18x4xf32, #tpu.memory_space<vmem>>, %arg3: memref<1x1x18x4xf32, #tpu.memory_space<vmem>>, %arg4: memref<1x1x18x4xf32, #tpu.memory_space<vmem>>, %arg5: memref<4x16x4xf32, #tpu.memory_space<vmem>>, %arg6: memref<1x8x256xf32, #tpu.memory_space<vmem>>) attributes {dimension_semantics = [#tpu.dimension_semantics<parallel>, #tpu.dimension_semantics<parallel>], iteration_bounds = array<i64: 2, 2>, scalar_prefetch = 0 : i64, scratch_operands = 0 : i64, tpu.core_type = #tpu.core_type<tc>, window_params = [{transform_indices = @transform_0, window_bounds = array<i64: 1, 8, 18, 4>}, {transform_indices = @transform_1, window_bounds = array<i64: 1, 1, 18, 4>}, {transform_indices = @transform_2, window_bounds = array<i64: 1, 1, 18, 4>}, {pipeline_mode = #tpu.pipeline_mode<synchronous>, transform_indices = @transform_3, window_bounds = array<i64: 4, 16, 4>}, {transform_indices = @transform_4, window_bounds = array<i64: 1, 8, 256>}]} {
    %c0 = arith.constant 0 : index
    %c0_0 = arith.constant 0 : index
    %c0_1 = arith.constant 0 : index
    %c0_2 = arith.constant 0 : index
    %0 = vector.load %arg2[%c0, %c0_0, %c0_1, %c0_2] : memref<1x8x18x4xf32, #tpu.memory_space<vmem>>, vector<1x8x18x4xf32>
    %1 = vector.shape_cast %0 : vector<1x8x18x4xf32> to vector<8x18x4xf32>
    %c0_3 = arith.constant 0 : index
    %c0_4 = arith.constant 0 : index
    %c0_5 = arith.constant 0 : index
    %c0_6 = arith.constant 0 : index
    %2 = vector.load %arg3[%c0_3, %c0_4, %c0_5, %c0_6] : memref<1x1x18x4xf32, #tpu.memory_space<vmem>>, vector<1x1x18x4xf32>
    %3 = vector.shape_cast %2 : vector<1x1x18x4xf32> to vector<1x18x4xf32>
    %c0_7 = arith.constant 0 : index
    %c0_8 = arith.constant 0 : index
    %c0_9 = arith.constant 0 : index
    %c0_10 = arith.constant 0 : index
    %4 = vector.load %arg4[%c0_7, %c0_8, %c0_9, %c0_10] : memref<1x1x18x4xf32, #tpu.memory_space<vmem>>, vector<1x1x18x4xf32>
    %5 = vector.shape_cast %4 : vector<1x1x18x4xf32> to vector<1x18x4xf32>
    %6 = tpu.concatenate %1, %3, %5 in 0 : vector<8x18x4xf32>, vector<1x18x4xf32>, vector<1x18x4xf32> -> vector<10x18x4xf32>
    %c0_11 = arith.constant 0 : index
    %c0_12 = arith.constant 0 : index
    %c0_13 = arith.constant 0 : index
    %7 = vector.load %arg5[%c0_11, %c0_12, %c0_13] : memref<4x16x4xf32, #tpu.memory_space<vmem>>, vector<4x16x4xf32>
    %8 = vector.extract_strided_slice %6 {offsets = [0, 0, 0], sizes = [8, 16, 4], strides = [1, 1, 1]} : vector<10x18x4xf32> to vector<8x16x4xf32>
    %9 = vector.extract_strided_slice %6 {offsets = [0, 1, 0], sizes = [8, 16, 4], strides = [1, 1, 1]} : vector<10x18x4xf32> to vector<8x16x4xf32>
    %10 = vector.extract_strided_slice %6 {offsets = [1, 0, 0], sizes = [8, 16, 4], strides = [1, 1, 1]} : vector<10x18x4xf32> to vector<8x16x4xf32>
    %11 = vector.extract_strided_slice %6 {offsets = [1, 1, 0], sizes = [8, 16, 4], strides = [1, 1, 1]} : vector<10x18x4xf32> to vector<8x16x4xf32>
    %12 = tpu.concatenate %8, %9, %10, %11 in 2 : vector<8x16x4xf32>, vector<8x16x4xf32>, vector<8x16x4xf32>, vector<8x16x4xf32> -> vector<8x16x16xf32>
    %13 = vector.extract_strided_slice %7 {offsets = [0, 0, 0], sizes = [1, 16, 4], strides = [1, 1, 1]} : vector<4x16x4xf32> to vector<1x16x4xf32>
    %14 = vector.shape_cast %13 : vector<1x16x4xf32> to vector<16x4xf32>
    %cst = arith.constant dense<0.000000e+00> : vector<8x16x4xf32>
    %15 = tpu.matmul %12, %14, %cst {dimension_numbers = #tpu.dot_dimension_numbers<[2], [0], [0, 1], [1], [0, 0, 0, 1, 1, 1], [], []>} : vector<8x16x16xf32>, vector<16x4xf32>, vector<8x16x4xf32> -> vector<8x16x4xf32>
    %16 = vector.extract_strided_slice %6 {offsets = [0, 1, 0], sizes = [8, 16, 4], strides = [1, 1, 1]} : vector<10x18x4xf32> to vector<8x16x4xf32>
    %17 = vector.extract_strided_slice %6 {offsets = [0, 2, 0], sizes = [8, 16, 4], strides = [1, 1, 1]} : vector<10x18x4xf32> to vector<8x16x4xf32>
    %18 = vector.extract_strided_slice %6 {offsets = [1, 1, 0], sizes = [8, 16, 4], strides = [1, 1, 1]} : vector<10x18x4xf32> to vector<8x16x4xf32>
    %19 = vector.extract_strided_slice %6 {offsets = [1, 2, 0], sizes = [8, 16, 4], strides = [1, 1, 1]} : vector<10x18x4xf32> to vector<8x16x4xf32>
    %20 = tpu.concatenate %16, %17, %18, %19 in 2 : vector<8x16x4xf32>, vector<8x16x4xf32>, vector<8x16x4xf32>, vector<8x16x4xf32> -> vector<8x16x16xf32>
    %21 = vector.extract_strided_slice %7 {offsets = [1, 0, 0], sizes = [1, 16, 4], strides = [1, 1, 1]} : vector<4x16x4xf32> to vector<1x16x4xf32>
    %22 = vector.shape_cast %21 : vector<1x16x4xf32> to vector<16x4xf32>
    %cst_14 = arith.constant dense<0.000000e+00> : vector<8x16x4xf32>
    %23 = tpu.matmul %20, %22, %cst_14 {dimension_numbers = #tpu.dot_dimension_numbers<[2], [0], [0, 1], [1], [0, 0, 0, 1, 1, 1], [], []>} : vector<8x16x16xf32>, vector<16x4xf32>, vector<8x16x4xf32> -> vector<8x16x4xf32>
    %24 = vector.extract_strided_slice %6 {offsets = [1, 0, 0], sizes = [8, 16, 4], strides = [1, 1, 1]} : vector<10x18x4xf32> to vector<8x16x4xf32>
    %25 = vector.extract_strided_slice %6 {offsets = [1, 1, 0], sizes = [8, 16, 4], strides = [1, 1, 1]} : vector<10x18x4xf32> to vector<8x16x4xf32>
    %26 = vector.extract_strided_slice %6 {offsets = [2, 0, 0], sizes = [8, 16, 4], strides = [1, 1, 1]} : vector<10x18x4xf32> to vector<8x16x4xf32>
    %27 = vector.extract_strided_slice %6 {offsets = [2, 1, 0], sizes = [8, 16, 4], strides = [1, 1, 1]} : vector<10x18x4xf32> to vector<8x16x4xf32>
    %28 = tpu.concatenate %24, %25, %26, %27 in 2 : vector<8x16x4xf32>, vector<8x16x4xf32>, vector<8x16x4xf32>, vector<8x16x4xf32> -> vector<8x16x16xf32>
    %29 = vector.extract_strided_slice %7 {offsets = [2, 0, 0], sizes = [1, 16, 4], strides = [1, 1, 1]} : vector<4x16x4xf32> to vector<1x16x4xf32>
    %30 = vector.shape_cast %29 : vector<1x16x4xf32> to vector<16x4xf32>
    %cst_15 = arith.constant dense<0.000000e+00> : vector<8x16x4xf32>
    %31 = tpu.matmul %28, %30, %cst_15 {dimension_numbers = #tpu.dot_dimension_numbers<[2], [0], [0, 1], [1], [0, 0, 0, 1, 1, 1], [], []>} : vector<8x16x16xf32>, vector<16x4xf32>, vector<8x16x4xf32> -> vector<8x16x4xf32>
    %32 = vector.extract_strided_slice %6 {offsets = [1, 1, 0], sizes = [8, 16, 4], strides = [1, 1, 1]} : vector<10x18x4xf32> to vector<8x16x4xf32>
    %33 = vector.extract_strided_slice %6 {offsets = [1, 2, 0], sizes = [8, 16, 4], strides = [1, 1, 1]} : vector<10x18x4xf32> to vector<8x16x4xf32>
    %34 = vector.extract_strided_slice %6 {offsets = [2, 1, 0], sizes = [8, 16, 4], strides = [1, 1, 1]} : vector<10x18x4xf32> to vector<8x16x4xf32>
    %35 = vector.extract_strided_slice %6 {offsets = [2, 2, 0], sizes = [8, 16, 4], strides = [1, 1, 1]} : vector<10x18x4xf32> to vector<8x16x4xf32>
    %36 = tpu.concatenate %32, %33, %34, %35 in 2 : vector<8x16x4xf32>, vector<8x16x4xf32>, vector<8x16x4xf32>, vector<8x16x4xf32> -> vector<8x16x16xf32>
    %37 = vector.extract_strided_slice %7 {offsets = [3, 0, 0], sizes = [1, 16, 4], strides = [1, 1, 1]} : vector<4x16x4xf32> to vector<1x16x4xf32>
    %38 = vector.shape_cast %37 : vector<1x16x4xf32> to vector<16x4xf32>
    %cst_16 = arith.constant dense<0.000000e+00> : vector<8x16x4xf32>
    %39 = tpu.matmul %36, %38, %cst_16 {dimension_numbers = #tpu.dot_dimension_numbers<[2], [0], [0, 1], [1], [0, 0, 0, 1, 1, 1], [], []>} : vector<8x16x16xf32>, vector<16x4xf32>, vector<8x16x4xf32> -> vector<8x16x4xf32>
    %40 = tpu.concatenate %15, %23, %31, %39 in 2 : vector<8x16x4xf32>, vector<8x16x4xf32>, vector<8x16x4xf32>, vector<8x16x4xf32> -> vector<8x16x16xf32>
    %41 = vector.shape_cast %40 : vector<8x16x16xf32> to vector<8x256xf32>
    %c0_17 = arith.constant 0 : index
    %c0_18 = arith.constant 0 : index
    %c0_19 = arith.constant 0 : index
    %42 = vector.load %arg6[%c0_17, %c0_18, %c0_19] : memref<1x8x256xf32, #tpu.memory_space<vmem>>, vector<1x8x256xf32>
    %43 = vector.shape_cast %42 : vector<1x8x256xf32> to vector<8x256xf32>
    %44 = vector.shape_cast %41 : vector<8x256xf32> to vector<1x8x256xf32>
    tpu.vector_store %arg6[%c0_17, %c0_18, %c0_19], %44 {strides = array<i32>} : memref<1x8x256xf32, #tpu.memory_space<vmem>>, vector<1x8x256xf32>,
    return
  }
  func.func @transform_0(%arg0: i32, %arg1: i32) -> (i32, i32, i32, i32) {
    %c0_i32 = arith.constant 0 : i32
    %c0_i32_0 = arith.constant 0 : i32
    %c0_i32_1 = arith.constant 0 : i32
    return %arg0, %arg1, %c0_i32, %c0_i32_0 : i32, i32, i32, i32
  }
  func.func @transform_1(%arg0: i32, %arg1: i32) -> (i32, i32, i32, i32) {
    %c8_i32 = arith.constant 8 : i32
    %0 = arith.muli %arg1, %c8_i32 : i32
    %c8_i32_0 = arith.constant 8 : i32
    %1 = arith.addi %0, %c8_i32_0 : i32
    %c0_i32 = arith.constant 0 : i32
    %c0_i32_1 = arith.constant 0 : i32
    %c0_i32_2 = arith.constant 0 : i32
    return %arg0, %1, %c0_i32, %c0_i32_1 : i32, i32, i32, i32
  }
  func.func @transform_2(%arg0: i32, %arg1: i32) -> (i32, i32, i32, i32) {
    %c8_i32 = arith.constant 8 : i32
    %0 = arith.muli %arg1, %c8_i32 : i32
    %c8_i32_0 = arith.constant 8 : i32
    %1 = arith.addi %0, %c8_i32_0 : i32
    %c1_i32 = arith.constant 1 : i32
    %2 = arith.addi %1, %c1_i32 : i32
    %c0_i32 = arith.constant 0 : i32
    %c0_i32_1 = arith.constant 0 : i32
    %c0_i32_2 = arith.constant 0 : i32
    return %arg0, %2, %c0_i32, %c0_i32_1 : i32, i32, i32, i32
  }
  func.func @transform_3(%arg0: i32, %arg1: i32) -> (i32, i32, i32) {
    %c0_i32 = arith.constant 0 : i32
    %c0_i32_0 = arith.constant 0 : i32
    %c0_i32_1 = arith.constant 0 : i32
    %c0_i32_2 = arith.constant 0 : i32
    return %c0_i32, %c0_i32_0, %c0_i32_1 : i32, i32, i32
  }
  func.func @transform_4(%arg0: i32, %arg1: i32) -> (i32, i32, i32) {
    %c0_i32 = arith.constant 0 : i32
    %c0_i32_0 = arith.constant 0 : i32
    return %arg0, %arg1, %c0_i32 : i32, i32, i32
  }
}

</mosaic_0001>

<llo_original>
// kernel: tpu_custom_call.1
$region0: #{tpu_custom_call.1}
  #allocation0 [shape = 'u32[]', space=smem, size = 0x4, offset = 0x4, fixed_abs, tag = 'smem constant byte address 0x4 - core index']
  #allocation1 [shape = 'u32[144,128]{1,0:T(1,128)}', space=vmem, size = 0x12000, scoped, tag = 'internal scratch']
  %s0 = inlined_call_operand.vmem [shape: f32[2,18,18,4], index: 0, kind: input, shape index: {}]
  %s1 = inlined_call_operand.vmem [shape: f32[2,18,18,4], index: 1, kind: input, shape index: {}]
  %s2 = inlined_call_operand.vmem [shape: f32[2,18,18,4], index: 2, kind: input, shape index: {}]
  %s3 = inlined_call_operand.vmem [shape: f32[4,16,4], index: 3, kind: input, shape index: {}]
  %s4 = inlined_call_operand.hbm [shape: f32[2,16,256], index: 4, kind: output, shape index: {}]
  %s5 = sld [smem:[#allocation0]]
  $region49: #{tpu_custom_call.1} parent=0
    _
  %s7 = ssub.s32 1, %s5
  %s8 = scalar_select 0, %s7, %s5
  $region1: #{tpu_custom_call.1} parent=0
    #allocation2 [shape = 'u8[16384]{0}', space=vmem, size = 0x4000, scoped, tag = 'output window, operand 0']
    #allocation3 [shape = 's32[2]{0}', space=sflag, size = 0x8, scoped, tag = 'scoped memory for tpu_custom_call.1']
    %9 = vsyncpa [#allocation3], 0
    %s10 = scalar_lea.sflag [#allocation3], 1
    %11 = vsyncpa %s10, 0
    loop: start=0, step=1, limit=6
    $region2: #{tpu_custom_call.1} parent=1 // loop_pre_header
      _
    $region3: #{tpu_custom_call.1} parent=1 // loop_header
      %s13 = sphi 0, %s17
      %p14 = scmp.ge.s32.totalorder %s13, 6
      %s20 = sphi 0, %s32
      %s21 = sphi 0, %s28
      %s22 = sphi 0, %s20
      %s23 = sphi 0, %s21
      %s24 = sphi 0, %s22
      %s25 = sphi 0, %s23
      %s37 = sphi 0, %s39
      %s40 = sphi 0, %s37
      %s41 = sphi 0, %s40
      %s57 = sphi 0, %s41
      %s69 = sphi 0, %s71
      %s72 = sphi 0, %s69
      %s73 = sphi 0, %s72
      %s89 = sphi 0, %s73
      %s101 = sphi 0, %s103
      %s104 = sphi 0, %s101
      %s105 = sphi 0, %s104
      %s121 = sphi 0, %s105
      %s125 = sphi 0, %s125
      %s127 = sphi 0, %s125
      %s128 = sphi 0, %s127
      %s142 = sphi 0, %s128
      %s150 = sphi 0, %s152
      %s153 = sphi 0, %s150
      %s154 = sphi 0, %s153
      %s170 = sphi 0, %s154
    $region4: #{tpu_custom_call.1} parent=1 // loop_header_branch
      %16 = sbr.rel (%p14) target = $region8
    $region5: #{tpu_custom_call.1} parent=1 // loop_body
      %s18 = ssub.s32 %s13, 1
      %s19 = ssub.s32 %s13, 2
      %s26 = sadd.s32 1, %s21
      %p27 = scmp.ge.s32.totalorder %s26, 2
      %s28 = scalar_select %p27, 0, %s26
      %s29 = sadd.s32 1, %s20
      %s30 = scalar_select %p27, %s29, %s20
      %p31 = scmp.ge.s32.totalorder %s30, 2
      %s32 = scalar_select %p31, 0, %s30
      %s33 = ssub.s32 %s20, %s32
      %s34 = ssub.s32 %s21, %s28
      %s35 = sor.u32 %s33, %s34
      %p36 = scmp.eq.s32.totalorder %s35, 0
      %s38 = sadd.s32 %s37, 1
      %s39 = scalar_select %p36, %s37, %s38
      %p42 = pneg %p36
      %p43 = scmp.eq.s32.totalorder %s13, 3
      %p44 = por %p42, %p43
      %p45 = scmp.ne.s32.totalorder %s37, %s40
      %p46 = scmp.eq.s32.totalorder %s13, 0
      %p47 = por %p45, %p46
      %p48 = scmp.ne.s32.totalorder %s37, %s40
      %p49 = scmp.eq.s32.totalorder %s18, 3
      %p50 = por %p48, %p49
      %p51 = scmp.ne.s32.totalorder %s40, %s41
      %p52 = scmp.eq.s32.totalorder %s18, 0
      %p53 = por %p51, %p52
      %p54 = scmp.ne.s32.totalorder %s40, %s41
      %p55 = scmp.eq.s32.totalorder %s19, 3
      %p56 = por %p54, %p55
      %p58 = scmp.ne.s32.totalorder %s41, %s57
      %p59 = scmp.eq.s32.totalorder %s19, 0
      %p60 = por %p58, %p59
      %s61 = smul.u32 %s21, 8
      %s62 = sadd.s32 %s61, 8
      %s63 = smul.u32 %s28, 8
      %s64 = sadd.s32 %s63, 8
      %s65 = ssub.s32 %s20, %s32
      %s66 = ssub.s32 %s62, %s64
      %s67 = sor.u32 %s65, %s66
      %p68 = scmp.eq.s32.totalorder %s67, 0
      %s70 = sadd.s32 %s69, 1
      %s71 = scalar_select %p68, %s69, %s70
      %p74 = pneg %p68
      %p75 = scmp.eq.s32.totalorder %s13, 3
      %p76 = por %p74, %p75
      %p77 = scmp.ne.s32.totalorder %s69, %s72
      %p78 = scmp.eq.s32.totalorder %s13, 0
      %p79 = por %p77, %p78
      %p80 = scmp.ne.s32.totalorder %s69, %s72
      %p81 = scmp.eq.s32.totalorder %s18, 3
      %p82 = por %p80, %p81
      %p83 = scmp.ne.s32.totalorder %s72, %s73
      %p84 = scmp.eq.s32.totalorder %s18, 0
      %p85 = por %p83, %p84
      %p86 = scmp.ne.s32.totalorder %s72, %s73
      %p87 = scmp.eq.s32.totalorder %s19, 3
      %p88 = por %p86, %p87
      %p90 = scmp.ne.s32.totalorder %s73, %s89
      %p91 = scmp.eq.s32.totalorder %s19, 0
      %p92 = por %p90, %p91
      %s93 = smul.u32 %s21, 8
      %s94 = sadd.s32 %s93, 9
      %s95 = smul.u32 %s28, 8
      %s96 = sadd.s32 %s95, 9
      %s97 = ssub.s32 %s20, %s32
      %s98 = ssub.s32 %s94, %s96
      %s99 = sor.u32 %s97, %s98
      %p100 = scmp.eq.s32.totalorder %s99, 0
      %s102 = sadd.s32 %s101, 1
      %s103 = scalar_select %p100, %s101, %s102
      %p106 = pneg %p100
      %p107 = scmp.eq.s32.totalorder %s13, 3
      %p108 = por %p106, %p107
      %p109 = scmp.ne.s32.totalorder %s101, %s104
      %p110 = scmp.eq.s32.totalorder %s13, 0
      %p111 = por %p109, %p110
      %p112 = scmp.ne.s32.totalorder %s101, %s104
      %p113 = scmp.eq.s32.totalorder %s18, 3
      %p114 = por %p112, %p113
      %p115 = scmp.ne.s32.totalorder %s104, %s105
      %p116 = scmp.eq.s32.totalorder %s18, 0
      %p117 = por %p115, %p116
      %p118 = scmp.ne.s32.totalorder %s104, %s105
      %p119 = scmp.eq.s32.totalorder %s19, 3
      %p120 = por %p118, %p119
      %p122 = scmp.ne.s32.totalorder %s105, %s121
      %p123 = scmp.eq.s32.totalorder %s19, 0
      %p124 = por %p122, %p123
      %s126 = sadd.s32 %s125, 1
      %p129 = scmp.eq.s32.totalorder %s13, 3
      %p130 = scmp.ne.s32.totalorder %s125, %s127
      %p131 = scmp.eq.s32.totalorder %s13, 0
      %p132 = por %p130, %p131
      %p133 = scmp.ne.s32.totalorder %s125, %s127
      %p134 = scmp.eq.s32.totalorder %s18, 3
      %p135 = por %p133, %p134
      %p136 = scmp.ne.s32.totalorder %s127, %s128
      %p137 = scmp.eq.s32.totalorder %s18, 0
      %p138 = por %p136, %p137
      %p139 = scmp.ne.s32.totalorder %s127, %s128
      %p140 = scmp.eq.s32.totalorder %s19, 3
      %p141 = por %p139, %p140
      %p143 = scmp.ne.s32.totalorder %s128, %s142
      %p144 = scmp.eq.s32.totalorder %s19, 0
      %p145 = por %p143, %p144
      %s146 = ssub.s32 %s20, %s32
      %s147 = ssub.s32 %s21, %s28
      %s148 = sor.u32 %s146, %s147
      %p149 = scmp.eq.s32.totalorder %s148, 0
      %s151 = sadd.s32 %s150, 1
      %s152 = scalar_select %p149, %s150, %s151
      %p155 = pneg %p149
      %p156 = scmp.eq.s32.totalorder %s13, 3
      %p157 = por %p155, %p156
      %p158 = scmp.ne.s32.totalorder %s150, %s153
      %p159 = scmp.eq.s32.totalorder %s13, 0
      %p160 = por %p158, %p159
      %p161 = scmp.ne.s32.totalorder %s150, %s153
      %p162 = scmp.eq.s32.totalorder %s18, 3
      %p163 = por %p161, %p162
      %p164 = scmp.ne.s32.totalorder %s153, %s154
      %p165 = scmp.eq.s32.totalorder %s18, 0
      %p166 = por %p164, %p165
      %p167 = scmp.ne.s32.totalorder %s153, %s154
      %p168 = scmp.eq.s32.totalorder %s19, 3
      %p169 = por %p167, %p168
      %p171 = scmp.ne.s32.totalorder %s154, %s170
      %p172 = scmp.eq.s32.totalorder %s19, 0
      %p173 = por %p171, %p172
      %p174 = scmp.le.s32.totalorder 1, %s13
      %p175 = scmp.lt.s32.totalorder %s13, 5
      %p176 = pnand %p174, %p175
      %p177 = pneg %p176
      // Predicated region
      $region9: #{tpu_custom_call.1} parent=5 // pred_check
        _
      $region10: #{tpu_custom_call.1} parent=5 // pred_check_branch
        %179 = sbr.rel (%p176) target = $region12
      $region11: #{tpu_custom_call.1} parent=5 // pred_region
        %s180 = ssub.s32 %s13, 1
        // Predicated region
        $region13: #{tpu_custom_call.1} parent=11 // pred_check
          %p181 = pneg %p138
        $region14: #{tpu_custom_call.1} parent=11 // pred_check_branch
          %183 = sbr.rel (%p181) target = $region16
        $region15: #{tpu_custom_call.1} parent=11 // pred_region
          _
        $region16: #{tpu_custom_call.1} parent=11 // pred_fallthru
          _
      $region12: #{tpu_custom_call.1} parent=5 // pred_fallthru
        _
      %p184 = scmp.lt.s32.totalorder %s13, 4
      // Predicated region
      $region17: #{tpu_custom_call.1} parent=5 // pred_check
        %p185 = pneg %p184
      $region18: #{tpu_custom_call.1} parent=5 // pred_check_branch
        %187 = sbr.rel (%p185) target = $region20
      $region19: #{tpu_custom_call.1} parent=5 // pred_region
        // Predicated region
        $region21: #{tpu_custom_call.1} parent=19 // pred_check
          %p188 = pneg %p47
        $region22: #{tpu_custom_call.1} parent=19 // pred_check_branch
          %190 = sbr.rel (%p188) target = $region24
        $region23: #{tpu_custom_call.1} parent=19 // pred_region
          %s191 = smul.u32 8, %s21
          %s192 = ssub.s32 18, %s191
          %p193 = scmp.lt.s32.totalorder %s192, 8
          %s194 = scalar_select %p193, %s192, 8
          %s195 = smul.u32 128, %s194
          %s196 = smul.u32 %s195, 3
          %p197 = scmp.lt.s32.totalorder %s20, 1
          %s198 = scalar_select %p197, %s20, 1
          %p199 = scmp.lt.s32.totalorder %s191, 17
          %s200 = scalar_select %p199, %s191, 17
          %s201 = smul.addr %s200, 3
          %s202 = smul.addr %s198, 54
          %s203 = sadd.s32 %s201, %s202
          %s204 = smul.addr %s203, 8
          %s205 = scalar_lea.vmem %s0, %s204
          %s206 = smul.u32 8, %s21
          %s207 = ssub.s32 18, %s206
          %p208 = scmp.lt.s32.totalorder %s207, 8
          %s209 = scalar_select %p208, %s207, 8
          %s210 = smul.u32 128, %s209
          %s211 = smul.u32 %s210, 3
        $region24: #{tpu_custom_call.1} parent=19 // pred_fallthru
          _
        // Predicated region
        $region25: #{tpu_custom_call.1} parent=19 // pred_check
          %p212 = pneg %p79
        $region26: #{tpu_custom_call.1} parent=19 // pred_check_branch
          %214 = sbr.rel (%p212) target = $region28
        $region27: #{tpu_custom_call.1} parent=19 // pred_region
          %s215 = smul.u32 %s21, 8
          %s216 = sadd.s32 %s215, 8
          %p217 = scmp.lt.s32.totalorder %s20, 1
          %s218 = scalar_select %p217, %s20, 1
          %p219 = scmp.lt.s32.totalorder %s216, 17
          %s220 = scalar_select %p219, %s216, 17
          %s221 = smul.addr %s220, 3
          %s222 = smul.addr %s218, 54
          %s223 = sadd.s32 %s221, %s222
          %s224 = smul.addr %s223, 8
          %s225 = scalar_lea.vmem %s1, %s224
          %s226 = smul.u32 %s21, 8
          %s227 = sadd.s32 %s226, 8
        $region28: #{tpu_custom_call.1} parent=19 // pred_fallthru
          _
        // Predicated region
        $region29: #{tpu_custom_call.1} parent=19 // pred_check
          %p228 = pneg %p111
        $region30: #{tpu_custom_call.1} parent=19 // pred_check_branch
          %230 = sbr.rel (%p228) target = $region32
        $region31: #{tpu_custom_call.1} parent=19 // pred_region
          %s231 = smul.u32 %s21, 8
          %s232 = sadd.s32 %s231, 9
          %p233 = scmp.lt.s32.totalorder %s20, 1
          %s234 = scalar_select %p233, %s20, 1
          %p235 = scmp.lt.s32.totalorder %s232, 17
          %s236 = scalar_select %p235, %s232, 17
          %s237 = smul.addr %s236, 3
          %s238 = smul.addr %s234, 54
          %s239 = sadd.s32 %s237, %s238
          %s240 = smul.addr %s239, 8
          %s241 = scalar_lea.vmem %s2, %s240
          %s242 = smul.u32 %s21, 8
          %s243 = sadd.s32 %s242, 9
        $region32: #{tpu_custom_call.1} parent=19 // pred_fallthru
          _
      $region20: #{tpu_custom_call.1} parent=5 // pred_fallthru
        _
      %p244 = scmp.le.s32.totalorder 1, %s13
      %p245 = scmp.lt.s32.totalorder %s13, 5
      %p246 = pnand %p244, %p245
      %p247 = pneg %p246
      // Predicated region
      $region33: #{tpu_custom_call.1} parent=5 // pred_check
        _
      $region34: #{tpu_custom_call.1} parent=5 // pred_check_branch
        %249 = sbr.rel (%p246) target = $region36
      $region35: #{tpu_custom_call.1} parent=5 // pred_region
        %s250 = ssub.s32 %s13, 1
        %s251 = smul.u32 8, %s23
        %s252 = ssub.s32 18, %s251
        %p253 = scmp.lt.s32.totalorder %s252, 8
        %s254 = scalar_select %p253, %s252, 8
        %s255 = smul.u32 128, %s254
        %s256 = smul.u32 %s255, 3
        %p257 = scmp.lt.s32.totalorder %s22, 1
        %s258 = scalar_select %p257, %s22, 1
        %p259 = scmp.lt.s32.totalorder %s251, 17
        %s260 = scalar_select %p259, %s251, 17
        %s261 = smul.addr %s260, 3
        %s262 = smul.addr %s258, 54
        %s263 = sadd.s32 %s261, %s262
        %s264 = smul.addr %s263, 8
        %s265 = scalar_lea.vmem %s0, %s264
        %p266 = pneg %p53
        %p267 = pneg %p50
        %s268 = smul.u32 %s23, 8
        %s269 = sadd.s32 %s268, 8
        %p270 = scmp.lt.s32.totalorder %s22, 1
        %s271 = scalar_select %p270, %s22, 1
        %p272 = scmp.lt.s32.totalorder %s269, 17
        %s273 = scalar_select %p272, %s269, 17
        %s274 = smul.addr %s273, 3
        %s275 = smul.addr %s271, 54
        %s276 = sadd.s32 %s274, %s275
        %s277 = smul.addr %s276, 8
        %s278 = scalar_lea.vmem %s1, %s277
        %p279 = pneg %p85
        %p280 = pneg %p82
        %s281 = smul.u32 %s23, 8
        %s282 = sadd.s32 %s281, 9
        %p283 = scmp.lt.s32.totalorder %s22, 1
        %s284 = scalar_select %p283, %s22, 1
        %p285 = scmp.lt.s32.totalorder %s282, 17
        %s286 = scalar_select %p285, %s282, 17
        %s287 = smul.addr %s286, 3
        %s288 = smul.addr %s284, 54
        %s289 = sadd.s32 %s287, %s288
        %s290 = smul.addr %s289, 8
        %s291 = scalar_lea.vmem %s2, %s290
        %p292 = pneg %p117
        %p293 = pneg %p114
        %p294 = pneg %p138
        %p295 = pneg %p135
        %p296 = pneg %p166
        %p297 = pneg %p163
        %s298 = sand.u32 %s153, 1
        %s299 = scalar_lea.sflag [#allocation3], %s298
        %s300 = sand.u32 %s153, 1
        %s301 = smul.addr %s300, 16
        %s302 = scalar_lea.vmem [#allocation2], %s301
        %s303 = smul.u32 8, %s23
        %s304 = ssub.s32 18, %s303
        %p305 = scmp.lt.s32.totalorder %s304, 8
        %s306 = scalar_select %p305, %s304, 8
        %s307 = smul.u32 128, %s306
        %s308 = smul.u32 %s307, 3
        %p309 = scmp.lt.s32.totalorder %s22, 1
        %s310 = scalar_select %p309, %s22, 1
        %p311 = scmp.lt.s32.totalorder %s303, 17
        %s312 = scalar_select %p311, %s303, 17
        %s313 = smul.addr %s312, 3
        %s314 = smul.addr %s310, 54
        %s315 = sadd.s32 %s313, %s314
        %s316 = smul.addr %s315, 8
        %s317 = scalar_lea.vmem %s0, %s316
        %s318 = smul.u32 8, %s23
        %s319 = ssub.s32 18, %s318
        %p320 = scmp.lt.s32.totalorder %s319, 8
        %s321 = scalar_select %p320, %s319, 8
        %s322 = smul.u32 128, %s321
        %s323 = smul.u32 %s322, 3
        %s324 = smul.u32 %s23, 8
        %s325 = sadd.s32 %s324, 8
        %p326 = scmp.lt.s32.totalorder %s22, 1
        %s327 = scalar_select %p326, %s22, 1
        %p328 = scmp.lt.s32.totalorder %s325, 17
        %s329 = scalar_select %p328, %s325, 17
        %s330 = smul.addr %s329, 3
        %s331 = smul.addr %s327, 54
        %s332 = sadd.s32 %s330, %s331
        %s333 = smul.addr %s332, 8
        %s334 = scalar_lea.vmem %s1, %s333
        %s335 = smul.u32 %s23, 8
        %s336 = sadd.s32 %s335, 8
        %s337 = smul.u32 %s23, 8
        %s338 = sadd.s32 %s337, 9
        %p339 = scmp.lt.s32.totalorder %s22, 1
        %s340 = scalar_select %p339, %s22, 1
        %p341 = scmp.lt.s32.totalorder %s338, 17
        %s342 = scalar_select %p341, %s338, 17
        %s343 = smul.addr %s342, 3
        %s344 = smul.addr %s340, 54
        %s345 = sadd.s32 %s343, %s344
        %s346 = smul.addr %s345, 8
        %s347 = scalar_lea.vmem %s2, %s346
        %s348 = smul.u32 %s23, 8
        %s349 = sadd.s32 %s348, 9
        %v350 = vld [vmem:[%s317] sm:$0xff]
        %v351 = vld [vmem:[%s317 + $0x8] sm:$0xff]
        %v352 = vld [vmem:[%s317 + $0x10] sm:$0x3]
        %v353 = vld [vmem:[%s317 + $0x18] sm:$0xff]
        %v354 = vld [vmem:[%s317 + $0x20] sm:$0xff]
        %v355 = vld [vmem:[%s317 + $0x28] sm:$0x3]
        %v356 = vld [vmem:[%s317 + $0x30] sm:$0xff]
        %v357 = vld [vmem:[%s317 + $0x38] sm:$0xff]
        %v358 = vld [vmem:[%s317 + $0x40] sm:$0x3]
        %v359 = vld [vmem:[%s317 + $0x48] sm:$0xff]
        %v360 = vld [vmem:[%s317 + $0x50] sm:$0xff]
        %v361 = vld [vmem:[%s317 + $0x58] sm:$0x3]
        %v362 = vld [vmem:[%s317 + $0x60] sm:$0xff]
        %v363 = vld [vmem:[%s317 + $0x68] sm:$0xff]
        %v364 = vld [vmem:[%s317 + $0x70] sm:$0x3]
        %v365 = vld [vmem:[%s317 + $0x78] sm:$0xff]
        %v366 = vld [vmem:[%s317 + $0x80] sm:$0xff]
        %v367 = vld [vmem:[%s317 + $0x88] sm:$0x3]
        %v368 = vld [vmem:[%s317 + $0x90] sm:$0xff]
        %v369 = vld [vmem:[%s317 + $0x98] sm:$0xff]
        %v370 = vld [vmem:[%s317 + $0xa0] sm:$0x3]
        %v371 = vld [vmem:[%s317 + $0xa8] sm:$0xff]
        %v372 = vld [vmem:[%s317 + $0xb0] sm:$0xff]
        %v373 = vld [vmem:[%s317 + $0xb8] sm:$0x3]
        %v374 = vld [vmem:[%s334] sm:$0xff]
        %v375 = vld [vmem:[%s334 + $0x8] sm:$0xff]
        %v376 = vld [vmem:[%s334 + $0x10] sm:$0x3]
        %v377 = vld [vmem:[%s347] sm:$0xff]
        %v378 = vld [vmem:[%s347 + $0x8] sm:$0xff]
        %v379 = vld [vmem:[%s347 + $0x10] sm:$0x3]
        %v380 = vld [vmem:[%s3] sm:$0xff]
        %v381 = vld [vmem:[%s3 + $0x8] sm:$0xff]
        %v382 = vld [vmem:[%s3 + $0x10] sm:$0xff]
        %v383 = vld [vmem:[%s3 + $0x18] sm:$0xff]
        %v384 = vld [vmem:[%s3 + $0x20] sm:$0xff]
        %v385 = vld [vmem:[%s3 + $0x28] sm:$0xff]
        %v386 = vld [vmem:[%s3 + $0x30] sm:$0xff]
        %v387 = vld [vmem:[%s3 + $0x38] sm:$0xff]
        %vm412 = vcmask 1046528
        %v413 = vrot.slane %v350, 1
        %v414 = vrot.slane %v351, 1
        %v415 = vsel %vm412, %v413, %v414
        %v416 = vrot.slane %v352, 1
        %v417 = vsel %vm412, %v414, %v416
        %v418 = vrot.slane %v353, 1
        %v419 = vrot.slane %v354, 1
        %v420 = vsel %vm412, %v418, %v419
        %v421 = vrot.slane %v355, 1
        %v422 = vsel %vm412, %v419, %v421
        %v423 = vrot.slane %v356, 1
        %v424 = vrot.slane %v357, 1
        %v425 = vsel %vm412, %v423, %v424
        %v426 = vrot.slane %v358, 1
        %v427 = vsel %vm412, %v424, %v426
        %v428 = vrot.slane %v359, 1
        %v429 = vrot.slane %v360, 1
        %v430 = vsel %vm412, %v428, %v429
        %v431 = vrot.slane %v361, 1
        %v432 = vsel %vm412, %v429, %v431
        %v433 = vrot.slane %v362, 1
        %v434 = vrot.slane %v363, 1
        %v435 = vsel %vm412, %v433, %v434
        %v436 = vrot.slane %v364, 1
        %v437 = vsel %vm412, %v434, %v436
        %v438 = vrot.slane %v365, 1
        %v439 = vrot.slane %v366, 1
        %v440 = vsel %vm412, %v438, %v439
        %v441 = vrot.slane %v367, 1
        %v442 = vsel %vm412, %v439, %v441
        %v443 = vrot.slane %v368, 1
        %v444 = vrot.slane %v369, 1
        %v445 = vsel %vm412, %v443, %v444
        %v446 = vrot.slane %v370, 1
        %v447 = vsel %vm412, %v444, %v446
        %v448 = vrot.slane %v371, 1
        %v449 = vrot.slane %v372, 1
        %v450 = vsel %vm412, %v448, %v449
        %v451 = vrot.slane %v373, 1
        %v452 = vsel %vm412, %v449, %v451
        %453 = vrot.lane.b32.xlu0 %v415, 4
        %v454 = vpop.permute.xlu0 %453
        %455 = vrot.lane.b32.xlu0 %v417, 4
        %v456 = vpop.permute.xlu0 %455
        %457 = vrot.lane.b32.xlu0 %v420, 4
        %v458 = vpop.permute.xlu0 %457
        %459 = vrot.lane.b32.xlu0 %v422, 4
        %v460 = vpop.permute.xlu0 %459
        %461 = vrot.lane.b32.xlu0 %v425, 4
        %v462 = vpop.permute.xlu0 %461
        %463 = vrot.lane.b32.xlu0 %v427, 4
        %v464 = vpop.permute.xlu0 %463
        %465 = vrot.lane.b32.xlu0 %v430, 4
        %v466 = vpop.permute.xlu0 %465
        %467 = vrot.lane.b32.xlu0 %v432, 4
        %v468 = vpop.permute.xlu0 %467
        %469 = vrot.lane.b32.xlu0 %v435, 4
        %v470 = vpop.permute.xlu0 %469
        %471 = vrot.lane.b32.xlu0 %v437, 4
        %v472 = vpop.permute.xlu0 %471
        %473 = vrot.lane.b32.xlu0 %v440, 4
        %v474 = vpop.permute.xlu0 %473
        %475 = vrot.lane.b32.xlu0 %v442, 4
        %v476 = vpop.permute.xlu0 %475
        %477 = vrot.lane.b32.xlu0 %v445, 4
        %v478 = vpop.permute.xlu0 %477
        %479 = vrot.lane.b32.xlu0 %v447, 4
        %v480 = vpop.permute.xlu0 %479
        %481 = vrot.lane.b32.xlu0 %v450, 4
        %v482 = vpop.permute.xlu0 %481
        %483 = vrot.lane.b32.xlu0 %v452, 4
        %v484 = vpop.permute.xlu0 %483
        %503 = vrot.lane.b32.xlu0 %v353, 8
        %v504 = vpop.permute.xlu0 %503
        %505 = vrot.lane.b32.xlu0 %v354, 8
        %v506 = vpop.permute.xlu0 %505
        %507 = vrot.lane.b32.xlu0 %v356, 8
        %v508 = vpop.permute.xlu0 %507
        %509 = vrot.lane.b32.xlu0 %v357, 8
        %v510 = vpop.permute.xlu0 %509
        %511 = vrot.lane.b32.xlu0 %v359, 8
        %v512 = vpop.permute.xlu0 %511
        %513 = vrot.lane.b32.xlu0 %v360, 8
        %v514 = vpop.permute.xlu0 %513
        %515 = vrot.lane.b32.xlu0 %v362, 8
        %v516 = vpop.permute.xlu0 %515
        %517 = vrot.lane.b32.xlu0 %v363, 8
        %v518 = vpop.permute.xlu0 %517
        %519 = vrot.lane.b32.xlu0 %v365, 8
        %v520 = vpop.permute.xlu0 %519
        %521 = vrot.lane.b32.xlu0 %v366, 8
        %v522 = vpop.permute.xlu0 %521
        %523 = vrot.lane.b32.xlu0 %v368, 8
        %v524 = vpop.permute.xlu0 %523
        %525 = vrot.lane.b32.xlu0 %v369, 8
        %v526 = vpop.permute.xlu0 %525
        %527 = vrot.lane.b32.xlu0 %v371, 8
        %v528 = vpop.permute.xlu0 %527
        %529 = vrot.lane.b32.xlu0 %v372, 8
        %v530 = vpop.permute.xlu0 %529
        %531 = vrot.lane.b32.xlu0 %v374, 8
        %v532 = vpop.permute.xlu0 %531
        %533 = vrot.lane.b32.xlu0 %v375, 8
        %v534 = vpop.permute.xlu0 %533
        %v552 = vrot.slane %v374, 1
        %v553 = vrot.slane %v375, 1
        %v554 = vsel %vm412, %v552, %v553
        %v555 = vrot.slane %v376, 1
        %v556 = vsel %vm412, %v553, %v555
        %557 = vrot.lane.b32.xlu0 %v420, 12
        %v558 = vpop.permute.xlu0 %557
        %559 = vrot.lane.b32.xlu0 %v422, 12
        %v560 = vpop.permute.xlu0 %559
        %561 = vrot.lane.b32.xlu0 %v425, 12
        %v562 = vpop.permute.xlu0 %561
        %563 = vrot.lane.b32.xlu0 %v427, 12
        %v564 = vpop.permute.xlu0 %563
        %565 = vrot.lane.b32.xlu0 %v430, 12
        %v566 = vpop.permute.xlu0 %565
        %567 = vrot.lane.b32.xlu0 %v432, 12
        %v568 = vpop.permute.xlu0 %567
        %569 = vrot.lane.b32.xlu0 %v435, 12
        %v570 = vpop.permute.xlu0 %569
        %571 = vrot.lane.b32.xlu0 %v437, 12
        %v572 = vpop.permute.xlu0 %571
        %573 = vrot.lane.b32.xlu0 %v440, 12
        %v574 = vpop.permute.xlu0 %573
        %575 = vrot.lane.b32.xlu0 %v442, 12
        %v576 = vpop.permute.xlu0 %575
        %577 = vrot.lane.b32.xlu0 %v445, 12
        %v578 = vpop.permute.xlu0 %577
        %579 = vrot.lane.b32.xlu0 %v447, 12
        %v580 = vpop.permute.xlu0 %579
        %581 = vrot.lane.b32.xlu0 %v450, 12
        %v582 = vpop.permute.xlu0 %581
        %583 = vrot.lane.b32.xlu0 %v452, 12
        %v584 = vpop.permute.xlu0 %583
        %585 = vrot.lane.b32.xlu0 %v554, 12
        %v586 = vpop.permute.xlu0 %585
        %587 = vrot.lane.b32.xlu0 %v556, 12
        %v588 = vpop.permute.xlu0 %587
        %vm605 = vcmask 31744
        %v606 = vsel %vm605, %v350, %v454
        %v607 = vsel %vm605, %v351, %v456
        %v608 = vsel %vm605, %v353, %v458
        %v609 = vsel %vm605, %v354, %v460
        %v610 = vsel %vm605, %v356, %v462
        %v611 = vsel %vm605, %v357, %v464
        %v612 = vsel %vm605, %v359, %v466
        %v613 = vsel %vm605, %v360, %v468
        %v614 = vsel %vm605, %v362, %v470
        %v615 = vsel %vm605, %v363, %v472
        %v616 = vsel %vm605, %v365, %v474
        %v617 = vsel %vm605, %v366, %v476
        %v618 = vsel %vm605, %v368, %v478
        %v619 = vsel %vm605, %v369, %v480
        %v620 = vsel %vm605, %v371, %v482
        %v621 = vsel %vm605, %v372, %v484
        %vm622 = vcmask 64512
        %v623 = vsel %vm622, %v606, %v504
        %v624 = vsel %vm622, %v607, %v506
        %v625 = vsel %vm622, %v608, %v508
        %v626 = vsel %vm622, %v609, %v510
        %v627 = vsel %vm622, %v610, %v512
        %v628 = vsel %vm622, %v611, %v514
        %v629 = vsel %vm622, %v612, %v516
        %v630 = vsel %vm622, %v613, %v518
        %v631 = vsel %vm622, %v614, %v520
        %v632 = vsel %vm622, %v615, %v522
        %v633 = vsel %vm622, %v616, %v524
        %v634 = vsel %vm622, %v617, %v526
        %v635 = vsel %vm622, %v618, %v528
        %v636 = vsel %vm622, %v619, %v530
        %v637 = vsel %vm622, %v620, %v532
        %v638 = vsel %vm622, %v621, %v534
        %vm639 = vcmask 97280
        %v640 = vsel %vm639, %v623, %v558
        %v641 = vsel %vm639, %v624, %v560
        %v642 = vsel %vm639, %v625, %v562
        %v643 = vsel %vm639, %v626, %v564
        %v644 = vsel %vm639, %v627, %v566
        %v645 = vsel %vm639, %v628, %v568
        %v646 = vsel %vm639, %v629, %v570
        %v647 = vsel %vm639, %v630, %v572
        %v648 = vsel %vm639, %v631, %v574
        %v649 = vsel %vm639, %v632, %v576
        %v650 = vsel %vm639, %v633, %v578
        %v651 = vsel %vm639, %v634, %v580
        %v652 = vsel %vm639, %v635, %v582
        %v653 = vsel %vm639, %v636, %v584
        %v654 = vsel %vm639, %v637, %v586
        %v655 = vsel %vm639, %v638, %v588
        %vm656 = vcmask 130048
        %v658 = vsel %vm656, %v640, 0
        %v661 = vsel %vm656, %v641, 0
        %v664 = vsel %vm656, %v642, 0
        %v667 = vsel %vm656, %v643, 0
        %v670 = vsel %vm656, %v644, 0
        %v673 = vsel %vm656, %v645, 0
        %v676 = vsel %vm656, %v646, 0
        %v679 = vsel %vm656, %v647, 0
        %v682 = vsel %vm656, %v648, 0
        %v685 = vsel %vm656, %v649, 0
        %v688 = vsel %vm656, %v650, 0
        %v691 = vsel %vm656, %v651, 0
        %v694 = vsel %vm656, %v652, 0
        %v697 = vsel %vm656, %v653, 0
        %v700 = vsel %vm656, %v654, 0
        %v703 = vsel %vm656, %v655, 0
        %705 = vmatprep.subr.mxu0 0.0
        %706 = vmatpush1.msra.mxu0 %v380
        %707 = vmatprep.subr.mxu0 0.0
        %708 = vmatpush1.msra.mxu0 %v381
        %709 = vmatprep.subr.mxu0 0.0
        %710 = vmatpush1.msra.mxu0 0.0
        %711 = vmatprep.subr.mxu0 0.0
        %712 = vmatpush1.msra.mxu0 0.0
        %713 = vmatprep.subr.mxu0 0.0
        %714 = vmatpush1.msra.mxu0 0.0
        %715 = vmatprep.subr.mxu0 0.0
        %716 = vmatpush1.msra.mxu0 0.0
        %717 = vmatprep.subr.mxu0 0.0
        %718 = vmatpush1.msra.mxu0 0.0
        %719 = vmatprep.subr.mxu0 0.0
        %720 = vmatpush1.msra.mxu0 0.0
        %721 = vmatprep.subr.mxu0 0.0
        %722 = vmatpush1.msra.mxu0 0.0
        %723 = vmatprep.subr.mxu0 0.0
        %724 = vmatpush1.msra.mxu0 0.0
        %725 = vmatprep.subr.mxu0 0.0
        %726 = vmatpush1.msra.mxu0 0.0
        %727 = vmatprep.subr.mxu0 0.0
        %728 = vmatpush1.msra.mxu0 0.0
        %729 = vmatprep.subr.mxu0 0.0
        %730 = vmatpush1.msra.mxu0 0.0
        %731 = vmatprep.subr.mxu0 0.0
        %732 = vmatpush1.msra.mxu0 0.0
        %733 = vmatprep.subr.mxu0 0.0
        %734 = vmatpush1.msra.mxu0 0.0
        %735 = vmatprep.subr.mxu0 0.0
        %736 = vmatpush1.msra.mxu0 0.0
        %737 = vmatprep.subr.mxu0 0.0
        %738 = vmatpush1.msra.mxu0 0.0
        %739 = vmatprep.subr.mxu0 0.0
        %740 = vmatpush1.msra.mxu0 0.0
        %741 = vmatprep.subr.mxu0 0.0
        %742 = vmatpush1.msra.mxu0 0.0
        %743 = vmatprep.subr.mxu0 0.0
        %744 = vmatpush1.msra.mxu0 0.0
        %745 = vmatprep.subr.mxu0 0.0
        %746 = vmatpush1.msra.mxu0 0.0
        %747 = vmatprep.subr.mxu0 0.0
        %748 = vmatpush1.msra.mxu0 0.0
        %749 = vmatprep.subr.mxu0 0.0
        %750 = vmatpush1.msra.mxu0 0.0
        %751 = vmatprep.subr.mxu0 0.0
        %752 = vmatpush1.msra.mxu0 0.0
        %753 = vmatprep.subr.mxu0 0.0
        %754 = vmatpush1.msra.mxu0 0.0
        %755 = vmatprep.subr.mxu0 0.0
        %756 = vmatpush1.msra.mxu0 0.0
        %757 = vmatprep.subr.mxu0 0.0
        %758 = vmatpush1.msra.mxu0 0.0
        %759 = vmatprep.subr.mxu0 0.0
        %760 = vmatpush1.msra.mxu0 0.0
        %761 = vmatprep.subr.mxu0 0.0
        %762 = vmatpush1.msra.mxu0 0.0
        %763 = vmatprep.subr.mxu0 0.0
        %764 = vmatpush1.msra.mxu0 0.0
        %765 = vmatprep.subr.mxu0 0.0
        %766 = vmatpush1.msra.mxu0 0.0
        %767 = vmatprep.subr.mxu0 0.0
        %768 = vmatpush1.msra.mxu0 0.0
        %769 = vmatprep.mubr.f32.mxu0 0.0
        %770 = vmatmul.mubr.f32.gmra.mrb[0].mxu0 %v658
        %v771 = vpop.f32.mrb[0].mxu0
        %v772 = vadd.f32 0.0, %v771
        %v773 = vpop.f32.mrb[0].mxu0
        %774 = vmatprep.mubr.f32.mxu0 0.0
        %775 = vmatmul.mubr.f32.gmra.mrb[0].mxu0 %v661
        %v776 = vpop.f32.mrb[0].mxu0
        %v777 = vadd.f32 0.0, %v776
        %v778 = vpop.f32.mrb[0].mxu0
        %779 = vmatprep.mubr.f32.mxu0 0.0
        %780 = vmatmul.mubr.f32.gmra.mrb[0].mxu0 %v664
        %v781 = vpop.f32.mrb[0].mxu0
        %v782 = vadd.f32 0.0, %v781
        %v783 = vpop.f32.mrb[0].mxu0
        %784 = vmatprep.mubr.f32.mxu0 0.0
        %785 = vmatmul.mubr.f32.gmra.mrb[0].mxu0 %v667
        %v786 = vpop.f32.mrb[0].mxu0
        %v787 = vadd.f32 0.0, %v786
        %v788 = vpop.f32.mrb[0].mxu0
        %789 = vmatprep.mubr.f32.mxu0 0.0
        %790 = vmatmul.mubr.f32.gmra.mrb[0].mxu0 %v670
        %v791 = vpop.f32.mrb[0].mxu0
        %v792 = vadd.f32 0.0, %v791
        %v793 = vpop.f32.mrb[0].mxu0
        %794 = vmatprep.mubr.f32.mxu0 0.0
        %795 = vmatmul.mubr.f32.gmra.mrb[0].mxu0 %v673
        %v796 = vpop.f32.mrb[0].mxu0
        %v797 = vadd.f32 0.0, %v796
        %v798 = vpop.f32.mrb[0].mxu0
        %799 = vmatprep.mubr.f32.mxu0 0.0
        %800 = vmatmul.mubr.f32.gmra.mrb[0].mxu0 %v676
        %v801 = vpop.f32.mrb[0].mxu0
        %v802 = vadd.f32 0.0, %v801
        %v803 = vpop.f32.mrb[0].mxu0
        %804 = vmatprep.mubr.f32.mxu0 0.0
        %805 = vmatmul.mubr.f32.gmra.mrb[0].mxu0 %v679
        %v806 = vpop.f32.mrb[0].mxu0
        %v807 = vadd.f32 0.0, %v806
        %v808 = vpop.f32.mrb[0].mxu0
        %809 = vmatprep.mubr.f32.mxu0 0.0
        %810 = vmatmul.mubr.f32.gmra.mrb[0].mxu0 %v682
        %v811 = vpop.f32.mrb[0].mxu0
        %v812 = vadd.f32 0.0, %v811
        %v813 = vpop.f32.mrb[0].mxu0
        %814 = vmatprep.mubr.f32.mxu0 0.0
        %815 = vmatmul.mubr.f32.gmra.mrb[0].mxu0 %v685
        %v816 = vpop.f32.mrb[0].mxu0
        %v817 = vadd.f32 0.0, %v816
        %v818 = vpop.f32.mrb[0].mxu0
        %819 = vmatprep.mubr.f32.mxu0 0.0
        %820 = vmatmul.mubr.f32.gmra.mrb[0].mxu0 %v688
        %v821 = vpop.f32.mrb[0].mxu0
        %v822 = vadd.f32 0.0, %v821
        %v823 = vpop.f32.mrb[0].mxu0
        %824 = vmatprep.mubr.f32.mxu0 0.0
        %825 = vmatmul.mubr.f32.gmra.mrb[0].mxu0 %v691
        %v826 = vpop.f32.mrb[0].mxu0
        %v827 = vadd.f32 0.0, %v826
        %v828 = vpop.f32.mrb[0].mxu0
        %829 = vmatprep.mubr.f32.mxu0 0.0
        %830 = vmatmul.mubr.f32.gmra.mrb[0].mxu0 %v694
        %v831 = vpop.f32.mrb[0].mxu0
        %v832 = vadd.f32 0.0, %v831
        %v833 = vpop.f32.mrb[0].mxu0
        %834 = vmatprep.mubr.f32.mxu0 0.0
        %835 = vmatmul.mubr.f32.gmra.mrb[0].mxu0 %v697
        %v836 = vpop.f32.mrb[0].mxu0
        %v837 = vadd.f32 0.0, %v836
        %v838 = vpop.f32.mrb[0].mxu0
        %839 = vmatprep.mubr.f32.mxu0 0.0
        %840 = vmatmul.mubr.f32.gmra.mrb[0].mxu0 %v700
        %v841 = vpop.f32.mrb[0].mxu0
        %v842 = vadd.f32 0.0, %v841
        %v843 = vpop.f32.mrb[0].mxu0
        %844 = vmatprep.mubr.f32.mxu0 0.0
        %845 = vmatmul.mubr.f32.gmra.mrb[0].mxu0 %v703
        %v846 = vpop.f32.mrb[0].mxu0
        %v847 = vadd.f32 0.0, %v846
        %v848 = vpop.f32.mrb[0].mxu0
        %849 = vdwg.mxu0
        %850 = vrot.lane.b32.xlu0 %v416, 4
        %v851 = vpop.permute.xlu0 %850
        %852 = vrot.lane.b32.xlu0 %v421, 4
        %v853 = vpop.permute.xlu0 %852
        %854 = vrot.lane.b32.xlu0 %v426, 4
        %v855 = vpop.permute.xlu0 %854
        %856 = vrot.lane.b32.xlu0 %v431, 4
        %v857 = vpop.permute.xlu0 %856
        %858 = vrot.lane.b32.xlu0 %v436, 4
        %v859 = vpop.permute.xlu0 %858
        %860 = vrot.lane.b32.xlu0 %v441, 4
        %v861 = vpop.permute.xlu0 %860
        %862 = vrot.lane.b32.xlu0 %v446, 4
        %v863 = vpop.permute.xlu0 %862
        %864 = vrot.lane.b32.xlu0 %v451, 4
        %v865 = vpop.permute.xlu0 %864
        %874 = vrot.lane.b32.xlu0 %v355, 8
        %v875 = vpop.permute.xlu0 %874
        %876 = vrot.lane.b32.xlu0 %v358, 8
        %v877 = vpop.permute.xlu0 %876
        %878 = vrot.lane.b32.xlu0 %v361, 8
        %v879 = vpop.permute.xlu0 %878
        %880 = vrot.lane.b32.xlu0 %v364, 8
        %v881 = vpop.permute.xlu0 %880
        %882 = vrot.lane.b32.xlu0 %v367, 8
        %v883 = vpop.permute.xlu0 %882
        %884 = vrot.lane.b32.xlu0 %v370, 8
        %v885 = vpop.permute.xlu0 %884
        %886 = vrot.lane.b32.xlu0 %v373, 8
        %v887 = vpop.permute.xlu0 %886
        %888 = vrot.lane.b32.xlu0 %v376, 8
        %v889 = vpop.permute.xlu0 %888
        %898 = vrot.lane.b32.xlu0 %v421, 12
        %v899 = vpop.permute.xlu0 %898
        %900 = vrot.lane.b32.xlu0 %v426, 12
        %v901 = vpop.permute.xlu0 %900
        %902 = vrot.lane.b32.xlu0 %v431, 12
        %v903 = vpop.permute.xlu0 %902
        %904 = vrot.lane.b32.xlu0 %v436, 12
        %v905 = vpop.permute.xlu0 %904
        %906 = vrot.lane.b32.xlu0 %v441, 12
        %v907 = vpop.permute.xlu0 %906
        %908 = vrot.lane.b32.xlu0 %v446, 12
        %v909 = vpop.permute.xlu0 %908
        %910 = vrot.lane.b32.xlu0 %v451, 12
        %v911 = vpop.permute.xlu0 %910
        %912 = vrot.lane.b32.xlu0 %v555, 12
        %v913 = vpop.permute.xlu0 %912
        %v922 = vsel %vm605, %v352, %v851
        %v923 = vsel %vm605, %v355, %v853
        %v924 = vsel %vm605, %v358, %v855
        %v925 = vsel %vm605, %v361, %v857
        %v926 = vsel %vm605, %v364, %v859
        %v927 = vsel %vm605, %v367, %v861
        %v928 = vsel %vm605, %v370, %v863
        %v929 = vsel %vm605, %v373, %v865
        %v930 = vsel %vm622, %v922, %v875
        %v931 = vsel %vm622, %v923, %v877
        %v932 = vsel %vm622, %v924, %v879
        %v933 = vsel %vm622, %v925, %v881
        %v934 = vsel %vm622, %v926, %v883
        %v935 = vsel %vm622, %v927, %v885
        %v936 = vsel %vm622, %v928, %v887
        %v937 = vsel %vm622, %v929, %v889
        %v938 = vsel %vm639, %v930, %v899
        %v939 = vsel %vm639, %v931, %v901
        %v940 = vsel %vm639, %v932, %v903
        %v941 = vsel %vm639, %v933, %v905
        %v942 = vsel %vm639, %v934, %v907
        %v943 = vsel %vm639, %v935, %v909
        %v944 = vsel %vm639, %v936, %v911
        %v945 = vsel %vm639, %v937, %v913
        %v954 = vrot.slane %v640, 1
        %v955 = vrot.slane %v641, 1
        %v956 = vsel %vm412, %v954, %v955
        %v957 = vrot.slane %v938, 1
        %v958 = vsel %vm412, %v955, %v957
        %v959 = vrot.slane %v642, 1
        %v960 = vrot.slane %v643, 1
        %v961 = vsel %vm412, %v959, %v960
        %v962 = vrot.slane %v939, 1
        %v963 = vsel %vm412, %v960, %v962
        %v964 = vrot.slane %v644, 1
        %v965 = vrot.slane %v645, 1
        %v966 = vsel %vm412, %v964, %v965
        %v967 = vrot.slane %v940, 1
        %v968 = vsel %vm412, %v965, %v967
        %v969 = vrot.slane %v646, 1
        %v970 = vrot.slane %v647, 1
        %v971 = vsel %vm412, %v969, %v970
        %v972 = vrot.slane %v941, 1
        %v973 = vsel %vm412, %v970, %v972
        %v974 = vrot.slane %v648, 1
        %v975 = vrot.slane %v649, 1
        %v976 = vsel %vm412, %v974, %v975
        %v977 = vrot.slane %v942, 1
        %v978 = vsel %vm412, %v975, %v977
        %v979 = vrot.slane %v650, 1
        %v980 = vrot.slane %v651, 1
        %v981 = vsel %vm412, %v979, %v980
        %v982 = vrot.slane %v943, 1
        %v983 = vsel %vm412, %v980, %v982
        %v984 = vrot.slane %v652, 1
        %v985 = vrot.slane %v653, 1
        %v986 = vsel %vm412, %v984, %v985
        %v987 = vrot.slane %v944, 1
        %v988 = vsel %vm412, %v985, %v987
        %v989 = vrot.slane %v654, 1
        %v990 = vrot.slane %v655, 1
        %v991 = vsel %vm412, %v989, %v990
        %v992 = vrot.slane %v945, 1
        %v993 = vsel %vm412, %v990, %v992
        %v994 = vsel %vm656, %v956, 0
        %v996 = vsel %vm656, %v958, 0
        %v998 = vsel %vm656, %v961, 0
        %v1000 = vsel %vm656, %v963, 0
        %v1002 = vsel %vm656, %v966, 0
        %v1004 = vsel %vm656, %v968, 0
        %v1006 = vsel %vm656, %v971, 0
        %v1008 = vsel %vm656, %v973, 0
        %v1010 = vsel %vm656, %v976, 0
        %v1012 = vsel %vm656, %v978, 0
        %v1014 = vsel %vm656, %v981, 0
        %v1016 = vsel %vm656, %v983, 0
        %v1018 = vsel %vm656, %v986, 0
        %v1020 = vsel %vm656, %v988, 0
        %v1022 = vsel %vm656, %v991, 0
        %v1024 = vsel %vm656, %v993, 0
        %1026 = vmatprep.subr.mxu0 0.0
        %1027 = vmatpush1.msra.mxu0 %v382
        %1028 = vmatprep.subr.mxu0 0.0
        %1029 = vmatpush1.msra.mxu0 %v383
        %1030 = vmatprep.subr.mxu0 0.0
        %1031 = vmatpush1.msra.mxu0 0.0
        %1032 = vmatprep.subr.mxu0 0.0
        %1033 = vmatpush1.msra.mxu0 0.0
        %1034 = vmatprep.subr.mxu0 0.0
        %1035 = vmatpush1.msra.mxu0 0.0
        %1036 = vmatprep.subr.mxu0 0.0
        %1037 = vmatpush1.msra.mxu0 0.0
        %1038 = vmatprep.subr.mxu0 0.0
        %1039 = vmatpush1.msra.mxu0 0.0
        %1040 = vmatprep.subr.mxu0 0.0
        %1041 = vmatpush1.msra.mxu0 0.0
        %1042 = vmatprep.subr.mxu0 0.0
        %1043 = vmatpush1.msra.mxu0 0.0
        %1044 = vmatprep.subr.mxu0 0.0
        %1045 = vmatpush1.msra.mxu0 0.0
        %1046 = vmatprep.subr.mxu0 0.0
        %1047 = vmatpush1.msra.mxu0 0.0
        %1048 = vmatprep.subr.mxu0 0.0
        %1049 = vmatpush1.msra.mxu0 0.0
        %1050 = vmatprep.subr.mxu0 0.0
        %1051 = vmatpush1.msra.mxu0 0.0
        %1052 = vmatprep.subr.mxu0 0.0
        %1053 = vmatpush1.msra.mxu0 0.0
        %1054 = vmatprep.subr.mxu0 0.0
        %1055 = vmatpush1.msra.mxu0 0.0
        %1056 = vmatprep.subr.mxu0 0.0
        %1057 = vmatpush1.msra.mxu0 0.0
        %1058 = vmatprep.subr.mxu0 0.0
        %1059 = vmatpush1.msra.mxu0 0.0
        %1060 = vmatprep.subr.mxu0 0.0
        %1061 = vmatpush1.msra.mxu0 0.0
        %1062 = vmatprep.subr.mxu0 0.0
        %1063 = vmatpush1.msra.mxu0 0.0
        %1064 = vmatprep.subr.mxu0 0.0
        %1065 = vmatpush1.msra.mxu0 0.0
        %1066 = vmatprep.subr.mxu0 0.0
        %1067 = vmatpush1.msra.mxu0 0.0
        %1068 = vmatprep.subr.mxu0 0.0
        %1069 = vmatpush1.msra.mxu0 0.0
        %1070 = vmatprep.subr.mxu0 0.0
        %1071 = vmatpush1.msra.mxu0 0.0
        %1072 = vmatprep.subr.mxu0 0.0
        %1073 = vmatpush1.msra.mxu0 0.0
        %1074 = vmatprep.subr.mxu0 0.0
        %1075 = vmatpush1.msra.mxu0 0.0
        %1076 = vmatprep.subr.mxu0 0.0
        %1077 = vmatpush1.msra.mxu0 0.0
        %1078 = vmatprep.subr.mxu0 0.0
        %1079 = vmatpush1.msra.mxu0 0.0
        %1080 = vmatprep.subr.mxu0 0.0
        %1081 = vmatpush1.msra.mxu0 0.0
        %1082 = vmatprep.subr.mxu0 0.0
        %1083 = vmatpush1.msra.mxu0 0.0
        %1084 = vmatprep.subr.mxu0 0.0
        %1085 = vmatpush1.msra.mxu0 0.0
        %1086 = vmatprep.subr.mxu0 0.0
        %1087 = vmatpush1.msra.mxu0 0.0
        %1088 = vmatprep.subr.mxu0 0.0
        %1089 = vmatpush1.msra.mxu0 0.0
        %1090 = vmatprep.mubr.f32.mxu0 0.0
        %1091 = vmatmul.mubr.f32.gmra.mrb[0].mxu0 %v994
        %v1092 = vpop.f32.mrb[0].mxu0
        %v1093 = vadd.f32 0.0, %v1092
        %v1094 = vpop.f32.mrb[0].mxu0
        %1095 = vmatprep.mubr.f32.mxu0 0.0
        %1096 = vmatmul.mubr.f32.gmra.mrb[0].mxu0 %v996
        %v1097 = vpop.f32.mrb[0].mxu0
        %v1098 = vadd.f32 0.0, %v1097
        %v1099 = vpop.f32.mrb[0].mxu0
        %1100 = vmatprep.mubr.f32.mxu0 0.0
        %1101 = vmatmul.mubr.f32.gmra.mrb[0].mxu0 %v998
        %v1102 = vpop.f32.mrb[0].mxu0
        %v1103 = vadd.f32 0.0, %v1102
        %v1104 = vpop.f32.mrb[0].mxu0
        %1105 = vmatprep.mubr.f32.mxu0 0.0
        %1106 = vmatmul.mubr.f32.gmra.mrb[0].mxu0 %v1000
        %v1107 = vpop.f32.mrb[0].mxu0
        %v1108 = vadd.f32 0.0, %v1107
        %v1109 = vpop.f32.mrb[0].mxu0
        %1110 = vmatprep.mubr.f32.mxu0 0.0
        %1111 = vmatmul.mubr.f32.gmra.mrb[0].mxu0 %v1002
        %v1112 = vpop.f32.mrb[0].mxu0
        %v1113 = vadd.f32 0.0, %v1112
        %v1114 = vpop.f32.mrb[0].mxu0
        %1115 = vmatprep.mubr.f32.mxu0 0.0
        %1116 = vmatmul.mubr.f32.gmra.mrb[0].mxu0 %v1004
        %v1117 = vpop.f32.mrb[0].mxu0
        %v1118 = vadd.f32 0.0, %v1117
        %v1119 = vpop.f32.mrb[0].mxu0
        %1120 = vmatprep.mubr.f32.mxu0 0.0
        %1121 = vmatmul.mubr.f32.gmra.mrb[0].mxu0 %v1006
        %v1122 = vpop.f32.mrb[0].mxu0
        %v1123 = vadd.f32 0.0, %v1122
        %v1124 = vpop.f32.mrb[0].mxu0
        %1125 = vmatprep.mubr.f32.mxu0 0.0
        %1126 = vmatmul.mubr.f32.gmra.mrb[0].mxu0 %v1008
        %v1127 = vpop.f32.mrb[0].mxu0
        %v1128 = vadd.f32 0.0, %v1127
        %v1129 = vpop.f32.mrb[0].mxu0
        %1130 = vmatprep.mubr.f32.mxu0 0.0
        %1131 = vmatmul.mubr.f32.gmra.mrb[0].mxu0 %v1010
        %v1132 = vpop.f32.mrb[0].mxu0
        %v1133 = vadd.f32 0.0, %v1132
        %v1134 = vpop.f32.mrb[0].mxu0
        %1135 = vmatprep.mubr.f32.mxu0 0.0
        %1136 = vmatmul.mubr.f32.gmra.mrb[0].mxu0 %v1012
        %v1137 = vpop.f32.mrb[0].mxu0
        %v1138 = vadd.f32 0.0, %v1137
        %v1139 = vpop.f32.mrb[0].mxu0
        %1140 = vmatprep.mubr.f32.mxu0 0.0
        %1141 = vmatmul.mubr.f32.gmra.mrb[0].mxu0 %v1014
        %v1142 = vpop.f32.mrb[0].mxu0
        %v1143 = vadd.f32 0.0, %v1142
        %v1144 = vpop.f32.mrb[0].mxu0
        %1145 = vmatprep.mubr.f32.mxu0 0.0
        %1146 = vmatmul.mubr.f32.gmra.mrb[0].mxu0 %v1016
        %v1147 = vpop.f32.mrb[0].mxu0
        %v1148 = vadd.f32 0.0, %v1147
        %v1149 = vpop.f32.mrb[0].mxu0
        %1150 = vmatprep.mubr.f32.mxu0 0.0
        %1151 = vmatmul.mubr.f32.gmra.mrb[0].mxu0 %v1018
        %v1152 = vpop.f32.mrb[0].mxu0
        %v1153 = vadd.f32 0.0, %v1152
        %v1154 = vpop.f32.mrb[0].mxu0
        %1155 = vmatprep.mubr.f32.mxu0 0.0
        %1156 = vmatmul.mubr.f32.gmra.mrb[0].mxu0 %v1020
        %v1157 = vpop.f32.mrb[0].mxu0
        %v1158 = vadd.f32 0.0, %v1157
        %v1159 = vpop.f32.mrb[0].mxu0
        %1160 = vmatprep.mubr.f32.mxu0 0.0
        %1161 = vmatmul.mubr.f32.gmra.mrb[0].mxu0 %v1022
        %v1162 = vpop.f32.mrb[0].mxu0
        %v1163 = vadd.f32 0.0, %v1162
        %v1164 = vpop.f32.mrb[0].mxu0
        %1165 = vmatprep.mubr.f32.mxu0 0.0
        %1166 = vmatmul.mubr.f32.gmra.mrb[0].mxu0 %v1024
        %v1167 = vpop.f32.mrb[0].mxu0
        %v1168 = vadd.f32 0.0, %v1167
        %v1169 = vpop.f32.mrb[0].mxu0
        %1170 = vdwg.mxu0
        %1171 = vrot.lane.b32.xlu0 %v554, 4
        %v1172 = vpop.permute.xlu0 %1171
        %1173 = vrot.lane.b32.xlu0 %v556, 4
        %v1174 = vpop.permute.xlu0 %1173
        %1179 = vrot.lane.b32.xlu0 %v377, 8
        %v1180 = vpop.permute.xlu0 %1179
        %1181 = vrot.lane.b32.xlu0 %v378, 8
        %v1182 = vpop.permute.xlu0 %1181
        %v1186 = vrot.slane %v377, 1
        %v1187 = vrot.slane %v378, 1
        %v1188 = vsel %vm412, %v1186, %v1187
        %v1189 = vrot.slane %v379, 1
        %v1190 = vsel %vm412, %v1187, %v1189
        %1191 = vrot.lane.b32.xlu0 %v1188, 12
        %v1192 = vpop.permute.xlu0 %1191
        %1193 = vrot.lane.b32.xlu0 %v1190, 12
        %v1194 = vpop.permute.xlu0 %1193
        %v1197 = vsel %vm605, %v374, %v1172
        %v1198 = vsel %vm605, %v375, %v1174
        %v1199 = vsel %vm622, %v1197, %v1180
        %v1200 = vsel %vm622, %v1198, %v1182
        %v1201 = vsel %vm639, %v1199, %v1192
        %v1202 = vsel %vm639, %v1200, %v1194
        %v1204 = vsel %vm656, %v1201, 0
        %v1207 = vsel %vm656, %v1202, 0
        %1209 = vmatprep.subr.mxu0 0.0
        %1210 = vmatpush1.msra.mxu0 %v384
        %1211 = vmatprep.subr.mxu0 0.0
        %1212 = vmatpush1.msra.mxu0 %v385
        %1213 = vmatprep.subr.mxu0 0.0
        %1214 = vmatpush1.msra.mxu0 0.0
        %1215 = vmatprep.subr.mxu0 0.0
        %1216 = vmatpush1.msra.mxu0 0.0
        %1217 = vmatprep.subr.mxu0 0.0
        %1218 = vmatpush1.msra.mxu0 0.0
        %1219 = vmatprep.subr.mxu0 0.0
        %1220 = vmatpush1.msra.mxu0 0.0
        %1221 = vmatprep.subr.mxu0 0.0
        %1222 = vmatpush1.msra.mxu0 0.0
        %1223 = vmatprep.subr.mxu0 0.0
        %1224 = vmatpush1.msra.mxu0 0.0
        %1225 = vmatprep.subr.mxu0 0.0
        %1226 = vmatpush1.msra.mxu0 0.0
        %1227 = vmatprep.subr.mxu0 0.0
        %1228 = vmatpush1.msra.mxu0 0.0
        %1229 = vmatprep.subr.mxu0 0.0
        %1230 = vmatpush1.msra.mxu0 0.0
        %1231 = vmatprep.subr.mxu0 0.0
        %1232 = vmatpush1.msra.mxu0 0.0
        %1233 = vmatprep.subr.mxu0 0.0
        %1234 = vmatpush1.msra.mxu0 0.0
        %1235 = vmatprep.subr.mxu0 0.0
        %1236 = vmatpush1.msra.mxu0 0.0
        %1237 = vmatprep.subr.mxu0 0.0
        %1238 = vmatpush1.msra.mxu0 0.0
        %1239 = vmatprep.subr.mxu0 0.0
        %1240 = vmatpush1.msra.mxu0 0.0
        %1241 = vmatprep.subr.mxu0 0.0
        %1242 = vmatpush1.msra.mxu0 0.0
        %1243 = vmatprep.subr.mxu0 0.0
        %1244 = vmatpush1.msra.mxu0 0.0
        %1245 = vmatprep.subr.mxu0 0.0
        %1246 = vmatpush1.msra.mxu0 0.0
        %1247 = vmatprep.subr.mxu0 0.0
        %1248 = vmatpush1.msra.mxu0 0.0
        %1249 = vmatprep.subr.mxu0 0.0
        %1250 = vmatpush1.msra.mxu0 0.0
        %1251 = vmatprep.subr.mxu0 0.0
        %1252 = vmatpush1.msra.mxu0 0.0
        %1253 = vmatprep.subr.mxu0 0.0
        %1254 = vmatpush1.msra.mxu0 0.0
        %1255 = vmatprep.subr.mxu0 0.0
        %1256 = vmatpush1.msra.mxu0 0.0
        %1257 = vmatprep.subr.mxu0 0.0
        %1258 = vmatpush1.msra.mxu0 0.0
        %1259 = vmatprep.subr.mxu0 0.0
        %1260 = vmatpush1.msra.mxu0 0.0
        %1261 = vmatprep.subr.mxu0 0.0
        %1262 = vmatpush1.msra.mxu0 0.0
        %1263 = vmatprep.subr.mxu0 0.0
        %1264 = vmatpush1.msra.mxu0 0.0
        %1265 = vmatprep.subr.mxu0 0.0
        %1266 = vmatpush1.msra.mxu0 0.0
        %1267 = vmatprep.subr.mxu0 0.0
        %1268 = vmatpush1.msra.mxu0 0.0
        %1269 = vmatprep.subr.mxu0 0.0
        %1270 = vmatpush1.msra.mxu0 0.0
        %1271 = vmatprep.subr.mxu0 0.0
        %1272 = vmatpush1.msra.mxu0 0.0
        %1273 = vmatprep.mubr.f32.mxu0 0.0
        %1274 = vmatmul.mubr.f32.gmra.mrb[0].mxu0 %v664
        %v1275 = vpop.f32.mrb[0].mxu0
        %v1276 = vadd.f32 0.0, %v1275
        %v1277 = vpop.f32.mrb[0].mxu0
        %1278 = vmatprep.mubr.f32.mxu0 0.0
        %1279 = vmatmul.mubr.f32.gmra.mrb[0].mxu0 %v667
        %v1280 = vpop.f32.mrb[0].mxu0
        %v1281 = vadd.f32 0.0, %v1280
        %v1282 = vpop.f32.mrb[0].mxu0
        %1283 = vmatprep.mubr.f32.mxu0 0.0
        %1284 = vmatmul.mubr.f32.gmra.mrb[0].mxu0 %v670
        %v1285 = vpop.f32.mrb[0].mxu0
        %v1286 = vadd.f32 0.0, %v1285
        %v1287 = vpop.f32.mrb[0].mxu0
        %1288 = vmatprep.mubr.f32.mxu0 0.0
        %1289 = vmatmul.mubr.f32.gmra.mrb[0].mxu0 %v673
        %v1290 = vpop.f32.mrb[0].mxu0
        %v1291 = vadd.f32 0.0, %v1290
        %v1292 = vpop.f32.mrb[0].mxu0
        %1293 = vmatprep.mubr.f32.mxu0 0.0
        %1294 = vmatmul.mubr.f32.gmra.mrb[0].mxu0 %v676
        %v1295 = vpop.f32.mrb[0].mxu0
        %v1296 = vadd.f32 0.0, %v1295
        %v1297 = vpop.f32.mrb[0].mxu0
        %1298 = vmatprep.mubr.f32.mxu0 0.0
        %1299 = vmatmul.mubr.f32.gmra.mrb[0].mxu0 %v679
        %v1300 = vpop.f32.mrb[0].mxu0
        %v1301 = vadd.f32 0.0, %v1300
        %v1302 = vpop.f32.mrb[0].mxu0
        %1303 = vmatprep.mubr.f32.mxu0 0.0
        %1304 = vmatmul.mubr.f32.gmra.mrb[0].mxu0 %v682
        %v1305 = vpop.f32.mrb[0].mxu0
        %v1306 = vadd.f32 0.0, %v1305
        %v1307 = vpop.f32.mrb[0].mxu0
        %1308 = vmatprep.mubr.f32.mxu0 0.0
        %1309 = vmatmul.mubr.f32.gmra.mrb[0].mxu0 %v685
        %v1310 = vpop.f32.mrb[0].mxu0
        %v1311 = vadd.f32 0.0, %v1310
        %v1312 = vpop.f32.mrb[0].mxu0
        %1313 = vmatprep.mubr.f32.mxu0 0.0
        %1314 = vmatmul.mubr.f32.gmra.mrb[0].mxu0 %v688
        %v1315 = vpop.f32.mrb[0].mxu0
        %v1316 = vadd.f32 0.0, %v1315
        %v1317 = vpop.f32.mrb[0].mxu0
        %1318 = vmatprep.mubr.f32.mxu0 0.0
        %1319 = vmatmul.mubr.f32.gmra.mrb[0].mxu0 %v691
        %v1320 = vpop.f32.mrb[0].mxu0
        %v1321 = vadd.f32 0.0, %v1320
        %v1322 = vpop.f32.mrb[0].mxu0
        %1323 = vmatprep.mubr.f32.mxu0 0.0
        %1324 = vmatmul.mubr.f32.gmra.mrb[0].mxu0 %v694
        %v1325 = vpop.f32.mrb[0].mxu0
        %v1326 = vadd.f32 0.0, %v1325
        %v1327 = vpop.f32.mrb[0].mxu0
        %1328 = vmatprep.mubr.f32.mxu0 0.0
        %1329 = vmatmul.mubr.f32.gmra.mrb[0].mxu0 %v697
        %v1330 = vpop.f32.mrb[0].mxu0
        %v1331 = vadd.f32 0.0, %v1330
        %v1332 = vpop.f32.mrb[0].mxu0
        %1333 = vmatprep.mubr.f32.mxu0 0.0
        %1334 = vmatmul.mubr.f32.gmra.mrb[0].mxu0 %v700
        %v1335 = vpop.f32.mrb[0].mxu0
        %v1336 = vadd.f32 0.0, %v1335
        %v1337 = vpop.f32.mrb[0].mxu0
        %1338 = vmatprep.mubr.f32.mxu0 0.0
        %1339 = vmatmul.mubr.f32.gmra.mrb[0].mxu0 %v703
        %v1340 = vpop.f32.mrb[0].mxu0
        %v1341 = vadd.f32 0.0, %v1340
        %v1342 = vpop.f32.mrb[0].mxu0
        %1343 = vmatprep.mubr.f32.mxu0 0.0
        %1344 = vmatmul.mubr.f32.gmra.mrb[0].mxu0 %v1204
        %v1345 = vpop.f32.mrb[0].mxu0
        %v1346 = vadd.f32 0.0, %v1345
        %v1347 = vpop.f32.mrb[0].mxu0
        %1348 = vmatprep.mubr.f32.mxu0 0.0
        %1349 = vmatmul.mubr.f32.gmra.mrb[0].mxu0 %v1207
        %v1350 = vpop.f32.mrb[0].mxu0
        %v1351 = vadd.f32 0.0, %v1350
        %v1352 = vpop.f32.mrb[0].mxu0
        %1353 = vdwg.mxu0
        %1354 = vrot.lane.b32.xlu0 %v555, 4
        %v1355 = vpop.permute.xlu0 %1354
        %1357 = vrot.lane.b32.xlu0 %v379, 8
        %v1358 = vpop.permute.xlu0 %1357
        %1360 = vrot.lane.b32.xlu0 %v1189, 12
        %v1361 = vpop.permute.xlu0 %1360
        %v1363 = vsel %vm605, %v376, %v1355
        %v1364 = vsel %vm622, %v1363, %v1358
        %v1365 = vsel %vm639, %v1364, %v1361
        %v1367 = vrot.slane %v1201, 1
        %v1368 = vrot.slane %v1202, 1
        %v1369 = vsel %vm412, %v1367, %v1368
        %v1370 = vrot.slane %v1365, 1
        %v1371 = vsel %vm412, %v1368, %v1370
        %v1372 = vsel %vm656, %v1369, 0
        %v1374 = vsel %vm656, %v1371, 0
        %1376 = vmatprep.subr.mxu0 0.0
        %1377 = vmatpush1.msra.mxu0 %v386
        %1378 = vmatprep.subr.mxu0 0.0
        %1379 = vmatpush1.msra.mxu0 %v387
        %1380 = vmatprep.subr.mxu0 0.0
        %1381 = vmatpush1.msra.mxu0 0.0
        %1382 = vmatprep.subr.mxu0 0.0
        %1383 = vmatpush1.msra.mxu0 0.0
        %1384 = vmatprep.subr.mxu0 0.0
        %1385 = vmatpush1.msra.mxu0 0.0
        %1386 = vmatprep.subr.mxu0 0.0
        %1387 = vmatpush1.msra.mxu0 0.0
        %1388 = vmatprep.subr.mxu0 0.0
        %1389 = vmatpush1.msra.mxu0 0.0
        %1390 = vmatprep.subr.mxu0 0.0
        %1391 = vmatpush1.msra.mxu0 0.0
        %1392 = vmatprep.subr.mxu0 0.0
        %1393 = vmatpush1.msra.mxu0 0.0
        %1394 = vmatprep.subr.mxu0 0.0
        %1395 = vmatpush1.msra.mxu0 0.0
        %1396 = vmatprep.subr.mxu0 0.0
        %1397 = vmatpush1.msra.mxu0 0.0
        %1398 = vmatprep.subr.mxu0 0.0
        %1399 = vmatpush1.msra.mxu0 0.0
        %1400 = vmatprep.subr.mxu0 0.0
        %1401 = vmatpush1.msra.mxu0 0.0
        %1402 = vmatprep.subr.mxu0 0.0
        %1403 = vmatpush1.msra.mxu0 0.0
        %1404 = vmatprep.subr.mxu0 0.0
        %1405 = vmatpush1.msra.mxu0 0.0
        %1406 = vmatprep.subr.mxu0 0.0
        %1407 = vmatpush1.msra.mxu0 0.0
        %1408 = vmatprep.subr.mxu0 0.0
        %1409 = vmatpush1.msra.mxu0 0.0
        %1410 = vmatprep.subr.mxu0 0.0
        %1411 = vmatpush1.msra.mxu0 0.0
        %1412 = vmatprep.subr.mxu0 0.0
        %1413 = vmatpush1.msra.mxu0 0.0
        %1414 = vmatprep.subr.mxu0 0.0
        %1415 = vmatpush1.msra.mxu0 0.0
        %1416 = vmatprep.subr.mxu0 0.0
        %1417 = vmatpush1.msra.mxu0 0.0
        %1418 = vmatprep.subr.mxu0 0.0
        %1419 = vmatpush1.msra.mxu0 0.0
        %1420 = vmatprep.subr.mxu0 0.0
        %1421 = vmatpush1.msra.mxu0 0.0
        %1422 = vmatprep.subr.mxu0 0.0
        %1423 = vmatpush1.msra.mxu0 0.0
        %1424 = vmatprep.subr.mxu0 0.0
        %1425 = vmatpush1.msra.mxu0 0.0
        %1426 = vmatprep.subr.mxu0 0.0
        %1427 = vmatpush1.msra.mxu0 0.0
        %1428 = vmatprep.subr.mxu0 0.0
        %1429 = vmatpush1.msra.mxu0 0.0
        %1430 = vmatprep.subr.mxu0 0.0
        %1431 = vmatpush1.msra.mxu0 0.0
        %1432 = vmatprep.subr.mxu0 0.0
        %1433 = vmatpush1.msra.mxu0 0.0
        %1434 = vmatprep.subr.mxu0 0.0
        %1435 = vmatpush1.msra.mxu0 0.0
        %1436 = vmatprep.subr.mxu0 0.0
        %1437 = vmatpush1.msra.mxu0 0.0
        %1438 = vmatprep.subr.mxu0 0.0
        %1439 = vmatpush1.msra.mxu0 0.0
        %1440 = vmatprep.mubr.f32.mxu0 0.0
        %1441 = vmatmul.mubr.f32.gmra.mrb[0].mxu0 %v998
        %v1442 = vpop.f32.mrb[0].mxu0
        %v1443 = vadd.f32 0.0, %v1442
        %v1444 = vpop.f32.mrb[0].mxu0
        %1445 = vmatprep.mubr.f32.mxu0 0.0
        %1446 = vmatmul.mubr.f32.gmra.mrb[0].mxu0 %v1000
        %v1447 = vpop.f32.mrb[0].mxu0
        %v1448 = vadd.f32 0.0, %v1447
        %v1449 = vpop.f32.mrb[0].mxu0
        %1450 = vmatprep.mubr.f32.mxu0 0.0
        %1451 = vmatmul.mubr.f32.gmra.mrb[0].mxu0 %v1002
        %v1452 = vpop.f32.mrb[0].mxu0
        %v1453 = vadd.f32 0.0, %v1452
        %v1454 = vpop.f32.mrb[0].mxu0
        %1455 = vmatprep.mubr.f32.mxu0 0.0
        %1456 = vmatmul.mubr.f32.gmra.mrb[0].mxu0 %v1004
        %v1457 = vpop.f32.mrb[0].mxu0
        %v1458 = vadd.f32 0.0, %v1457
        %v1459 = vpop.f32.mrb[0].mxu0
        %1460 = vmatprep.mubr.f32.mxu0 0.0
        %1461 = vmatmul.mubr.f32.gmra.mrb[0].mxu0 %v1006
        %v1462 = vpop.f32.mrb[0].mxu0
        %v1463 = vadd.f32 0.0, %v1462
        %v1464 = vpop.f32.mrb[0].mxu0
        %1465 = vmatprep.mubr.f32.mxu0 0.0
        %1466 = vmatmul.mubr.f32.gmra.mrb[0].mxu0 %v1008
        %v1467 = vpop.f32.mrb[0].mxu0
        %v1468 = vadd.f32 0.0, %v1467
        %v1469 = vpop.f32.mrb[0].mxu0
        %1470 = vmatprep.mubr.f32.mxu0 0.0
        %1471 = vmatmul.mubr.f32.gmra.mrb[0].mxu0 %v1010
        %v1472 = vpop.f32.mrb[0].mxu0
        %v1473 = vadd.f32 0.0, %v1472
        %v1474 = vpop.f32.mrb[0].mxu0
        %1475 = vmatprep.mubr.f32.mxu0 0.0
        %1476 = vmatmul.mubr.f32.gmra.mrb[0].mxu0 %v1012
        %v1477 = vpop.f32.mrb[0].mxu0
        %v1478 = vadd.f32 0.0, %v1477
        %v1479 = vpop.f32.mrb[0].mxu0
        %1480 = vmatprep.mubr.f32.mxu0 0.0
        %1481 = vmatmul.mubr.f32.gmra.mrb[0].mxu0 %v1014
        %v1482 = vpop.f32.mrb[0].mxu0
        %v1483 = vadd.f32 0.0, %v1482
        %v1484 = vpop.f32.mrb[0].mxu0
        %1485 = vmatprep.mubr.f32.mxu0 0.0
        %1486 = vmatmul.mubr.f32.gmra.mrb[0].mxu0 %v1016
        %v1487 = vpop.f32.mrb[0].mxu0
        %v1488 = vadd.f32 0.0, %v1487
        %v1489 = vpop.f32.mrb[0].mxu0
        %1490 = vmatprep.mubr.f32.mxu0 0.0
        %1491 = vmatmul.mubr.f32.gmra.mrb[0].mxu0 %v1018
        %v1492 = vpop.f32.mrb[0].mxu0
        %v1493 = vadd.f32 0.0, %v1492
        %v1494 = vpop.f32.mrb[0].mxu0
        %1495 = vmatprep.mubr.f32.mxu0 0.0
        %1496 = vmatmul.mubr.f32.gmra.mrb[0].mxu0 %v1020
        %v1497 = vpop.f32.mrb[0].mxu0
        %v1498 = vadd.f32 0.0, %v1497
        %v1499 = vpop.f32.mrb[0].mxu0
        %1500 = vmatprep.mubr.f32.mxu0 0.0
        %1501 = vmatmul.mubr.f32.gmra.mrb[0].mxu0 %v1022
        %v1502 = vpop.f32.mrb[0].mxu0
        %v1503 = vadd.f32 0.0, %v1502
        %v1504 = vpop.f32.mrb[0].mxu0
        %1505 = vmatprep.mubr.f32.mxu0 0.0
        %1506 = vmatmul.mubr.f32.gmra.mrb[0].mxu0 %v1024
        %v1507 = vpop.f32.mrb[0].mxu0
        %v1508 = vadd.f32 0.0, %v1507
        %v1509 = vpop.f32.mrb[0].mxu0
        %1510 = vmatprep.mubr.f32.mxu0 0.0
        %1511 = vmatmul.mubr.f32.gmra.mrb[0].mxu0 %v1372
        %v1512 = vpop.f32.mrb[0].mxu0
        %v1513 = vadd.f32 0.0, %v1512
        %v1514 = vpop.f32.mrb[0].mxu0
        %1515 = vmatprep.mubr.f32.mxu0 0.0
        %1516 = vmatmul.mubr.f32.gmra.mrb[0].mxu0 %v1374
        %v1517 = vpop.f32.mrb[0].mxu0
        %v1518 = vadd.f32 0.0, %v1517
        %v1519 = vpop.f32.mrb[0].mxu0
        %1520 = vdwg.mxu0
        %1537 = vrot.lane.b32.xlu0 %v1093, 4
        %v1538 = vpop.permute.xlu0 %1537
        %1539 = vrot.lane.b32.xlu0 %v1098, 4
        %v1540 = vpop.permute.xlu0 %1539
        %1541 = vrot.lane.b32.xlu0 %v1103, 4
        %v1542 = vpop.permute.xlu0 %1541
        %1543 = vrot.lane.b32.xlu0 %v1108, 4
        %v1544 = vpop.permute.xlu0 %1543
        %1545 = vrot.lane.b32.xlu0 %v1113, 4
        %v1546 = vpop.permute.xlu0 %1545
        %1547 = vrot.lane.b32.xlu0 %v1118, 4
        %v1548 = vpop.permute.xlu0 %1547
        %1549 = vrot.lane.b32.xlu0 %v1123, 4
        %v1550 = vpop.permute.xlu0 %1549
        %1551 = vrot.lane.b32.xlu0 %v1128, 4
        %v1552 = vpop.permute.xlu0 %1551
        %1553 = vrot.lane.b32.xlu0 %v1133, 4
        %v1554 = vpop.permute.xlu0 %1553
        %1555 = vrot.lane.b32.xlu0 %v1138, 4
        %v1556 = vpop.permute.xlu0 %1555
        %1557 = vrot.lane.b32.xlu0 %v1143, 4
        %v1558 = vpop.permute.xlu0 %1557
        %1559 = vrot.lane.b32.xlu0 %v1148, 4
        %v1560 = vpop.permute.xlu0 %1559
        %1561 = vrot.lane.b32.xlu0 %v1153, 4
        %v1562 = vpop.permute.xlu0 %1561
        %1563 = vrot.lane.b32.xlu0 %v1158, 4
        %v1564 = vpop.permute.xlu0 %1563
        %1565 = vrot.lane.b32.xlu0 %v1163, 4
        %v1566 = vpop.permute.xlu0 %1565
        %1567 = vrot.lane.b32.xlu0 %v1168, 4
        %v1568 = vpop.permute.xlu0 %1567
        %1601 = vrot.lane.b32.xlu0 %v1276, 8
        %v1602 = vpop.permute.xlu0 %1601
        %1603 = vrot.lane.b32.xlu0 %v1281, 8
        %v1604 = vpop.permute.xlu0 %1603
        %1605 = vrot.lane.b32.xlu0 %v1286, 8
        %v1606 = vpop.permute.xlu0 %1605
        %1607 = vrot.lane.b32.xlu0 %v1291, 8
        %v1608 = vpop.permute.xlu0 %1607
        %1609 = vrot.lane.b32.xlu0 %v1296, 8
        %v1610 = vpop.permute.xlu0 %1609
        %1611 = vrot.lane.b32.xlu0 %v1301, 8
        %v1612 = vpop.permute.xlu0 %1611
        %1613 = vrot.lane.b32.xlu0 %v1306, 8
        %v1614 = vpop.permute.xlu0 %1613
        %1615 = vrot.lane.b32.xlu0 %v1311, 8
        %v1616 = vpop.permute.xlu0 %1615
        %1617 = vrot.lane.b32.xlu0 %v1316, 8
        %v1618 = vpop.permute.xlu0 %1617
        %1619 = vrot.lane.b32.xlu0 %v1321, 8
        %v1620 = vpop.permute.xlu0 %1619
        %1621 = vrot.lane.b32.xlu0 %v1326, 8
        %v1622 = vpop.permute.xlu0 %1621
        %1623 = vrot.lane.b32.xlu0 %v1331, 8
        %v1624 = vpop.permute.xlu0 %1623
        %1625 = vrot.lane.b32.xlu0 %v1336, 8
        %v1626 = vpop.permute.xlu0 %1625
        %1627 = vrot.lane.b32.xlu0 %v1341, 8
        %v1628 = vpop.permute.xlu0 %1627
        %1629 = vrot.lane.b32.xlu0 %v1346, 8
        %v1630 = vpop.permute.xlu0 %1629
        %1631 = vrot.lane.b32.xlu0 %v1351, 8
        %v1632 = vpop.permute.xlu0 %1631
        %1665 = vrot.lane.b32.xlu0 %v1443, 12
        %v1666 = vpop.permute.xlu0 %1665
        %1667 = vrot.lane.b32.xlu0 %v1448, 12
        %v1668 = vpop.permute.xlu0 %1667
        %1669 = vrot.lane.b32.xlu0 %v1453, 12
        %v1670 = vpop.permute.xlu0 %1669
        %1671 = vrot.lane.b32.xlu0 %v1458, 12
        %v1672 = vpop.permute.xlu0 %1671
        %1673 = vrot.lane.b32.xlu0 %v1463, 12
        %v1674 = vpop.permute.xlu0 %1673
        %1675 = vrot.lane.b32.xlu0 %v1468, 12
        %v1676 = vpop.permute.xlu0 %1675
        %1677 = vrot.lane.b32.xlu0 %v1473, 12
        %v1678 = vpop.permute.xlu0 %1677
        %1679 = vrot.lane.b32.xlu0 %v1478, 12
        %v1680 = vpop.permute.xlu0 %1679
        %1681 = vrot.lane.b32.xlu0 %v1483, 12
        %v1682 = vpop.permute.xlu0 %1681
        %1683 = vrot.lane.b32.xlu0 %v1488, 12
        %v1684 = vpop.permute.xlu0 %1683
        %1685 = vrot.lane.b32.xlu0 %v1493, 12
        %v1686 = vpop.permute.xlu0 %1685
        %1687 = vrot.lane.b32.xlu0 %v1498, 12
        %v1688 = vpop.permute.xlu0 %1687
        %1689 = vrot.lane.b32.xlu0 %v1503, 12
        %v1690 = vpop.permute.xlu0 %1689
        %1691 = vrot.lane.b32.xlu0 %v1508, 12
        %v1692 = vpop.permute.xlu0 %1691
        %1693 = vrot.lane.b32.xlu0 %v1513, 12
        %v1694 = vpop.permute.xlu0 %1693
        %1695 = vrot.lane.b32.xlu0 %v1518, 12
        %v1696 = vpop.permute.xlu0 %1695
        %v1713 = vsel %vm605, %v772, %v1538
        %v1714 = vsel %vm605, %v777, %v1540
        %v1715 = vsel %vm605, %v782, %v1542
        %v1716 = vsel %vm605, %v787, %v1544
        %v1717 = vsel %vm605, %v792, %v1546
        %v1718 = vsel %vm605, %v797, %v1548
        %v1719 = vsel %vm605, %v802, %v1550
        %v1720 = vsel %vm605, %v807, %v1552
        %v1721 = vsel %vm605, %v812, %v1554
        %v1722 = vsel %vm605, %v817, %v1556
        %v1723 = vsel %vm605, %v822, %v1558
        %v1724 = vsel %vm605, %v827, %v1560
        %v1725 = vsel %vm605, %v832, %v1562
        %v1726 = vsel %vm605, %v837, %v1564
        %v1727 = vsel %vm605, %v842, %v1566
        %v1728 = vsel %vm605, %v847, %v1568
        %v1729 = vsel %vm622, %v1713, %v1602
        %v1730 = vsel %vm622, %v1714, %v1604
        %v1731 = vsel %vm622, %v1715, %v1606
        %v1732 = vsel %vm622, %v1716, %v1608
        %v1733 = vsel %vm622, %v1717, %v1610
        %v1734 = vsel %vm622, %v1718, %v1612
        %v1735 = vsel %vm622, %v1719, %v1614
        %v1736 = vsel %vm622, %v1720, %v1616
        %v1737 = vsel %vm622, %v1721, %v1618
        %v1738 = vsel %vm622, %v1722, %v1620
        %v1739 = vsel %vm622, %v1723, %v1622
        %v1740 = vsel %vm622, %v1724, %v1624
        %v1741 = vsel %vm622, %v1725, %v1626
        %v1742 = vsel %vm622, %v1726, %v1628
        %v1743 = vsel %vm622, %v1727, %v1630
        %v1744 = vsel %vm622, %v1728, %v1632
        %v1745 = vsel %vm639, %v1729, %v1666
        %v1746 = vsel %vm639, %v1730, %v1668
        %v1747 = vsel %vm639, %v1731, %v1670
        %v1748 = vsel %vm639, %v1732, %v1672
        %v1749 = vsel %vm639, %v1733, %v1674
        %v1750 = vsel %vm639, %v1734, %v1676
        %v1751 = vsel %vm639, %v1735, %v1678
        %v1752 = vsel %vm639, %v1736, %v1680
        %v1753 = vsel %vm639, %v1737, %v1682
        %v1754 = vsel %vm639, %v1738, %v1684
        %v1755 = vsel %vm639, %v1739, %v1686
        %v1756 = vsel %vm639, %v1740, %v1688
        %v1757 = vsel %vm639, %v1741, %v1690
        %v1758 = vsel %vm639, %v1742, %v1692
        %v1759 = vsel %vm639, %v1743, %v1694
        %v1760 = vsel %vm639, %v1744, %v1696
        %v1761 = vcombine.low %v1745, %v1749
        %v1762 = vcombine.high %v1745, %v1749
        %v1764 = vunpack.c.l.s4 1983009808
        %v1765 = vunpack.c.0.s8 %v1764
        %v1766 = vlaneseq
        %v1767 = vshrl.u32 %v1766, 7
        %v1768 = vsub.s32 %v1765, %v1767
        %v1769 = vrot.slane %v1761, %v1768
        %v1771 = vunpack.c.l.s4 1983009808
        %v1772 = vunpack.c.0.s8 %v1771
        %v1773 = vlaneseq
        %v1774 = vshrl.u32 %v1773, 7
        %v1775 = vsub.s32 %v1772, %v1774
        %v1776 = vrot.slane %v1762, %v1775
        %v1777 = vcombine.low %v1747, %v1751
        %v1778 = vcombine.high %v1747, %v1751
        %v1780 = vunpack.c.l.s4 1983009808
        %v1781 = vunpack.c.0.s8 %v1780
        %v1782 = vlaneseq
        %v1783 = vshrl.u32 %v1782, 7
        %v1784 = vsub.s32 %v1781, %v1783
        %v1785 = vrot.slane %v1777, %v1784
        %v1787 = vunpack.c.l.s4 1983009808
        %v1788 = vunpack.c.0.s8 %v1787
        %v1789 = vlaneseq
        %v1790 = vshrl.u32 %v1789, 7
        %v1791 = vsub.s32 %v1788, %v1790
        %v1792 = vrot.slane %v1778, %v1791
        %v1793 = vcombine.low %v1753, %v1757
        %v1794 = vcombine.high %v1753, %v1757
        %v1796 = vunpack.c.l.s4 1983009808
        %v1797 = vunpack.c.0.s8 %v1796
        %v1798 = vlaneseq
        %v1799 = vshrl.u32 %v1798, 7
        %v1800 = vsub.s32 %v1797, %v1799
        %v1801 = vrot.slane %v1793, %v1800
        %v1803 = vunpack.c.l.s4 1983009808
        %v1804 = vunpack.c.0.s8 %v1803
        %v1805 = vlaneseq
        %v1806 = vshrl.u32 %v1805, 7
        %v1807 = vsub.s32 %v1804, %v1806
        %v1808 = vrot.slane %v1794, %v1807
        %v1809 = vcombine.low %v1755, %v1759
        %v1810 = vcombine.high %v1755, %v1759
        %v1812 = vunpack.c.l.s4 1983009808
        %v1813 = vunpack.c.0.s8 %v1812
        %v1814 = vlaneseq
        %v1815 = vshrl.u32 %v1814, 7
        %v1816 = vsub.s32 %v1813, %v1815
        %v1817 = vrot.slane %v1809, %v1816
        %v1819 = vunpack.c.l.s4 1983009808
        %v1820 = vunpack.c.0.s8 %v1819
        %v1821 = vlaneseq
        %v1822 = vshrl.u32 %v1821, 7
        %v1823 = vsub.s32 %v1820, %v1822
        %v1824 = vrot.slane %v1810, %v1823
        %v1825 = vcombine.low %v1769, %v1785
        %v1826 = vcombine.high %v1769, %v1785
        %v1828 = vunpack.c.l.s4 1934713408
        %v1829 = vunpack.c.0.s8 %v1828
        %v1830 = vlaneseq
        %v1831 = vshrl.u32 %v1830, 7
        %v1832 = vsub.s32 %v1829, %v1831
        %v1833 = vrot.slane %v1825, %v1832
        %v1835 = vunpack.c.l.s4 1934713408
        %v1836 = vunpack.c.0.s8 %v1835
        %v1837 = vlaneseq
        %v1838 = vshrl.u32 %v1837, 7
        %v1839 = vsub.s32 %v1836, %v1838
        %v1840 = vrot.slane %v1826, %v1839
        %v1841 = vcombine.low %v1776, %v1792
        %v1842 = vcombine.high %v1776, %v1792
        %v1844 = vunpack.c.l.s4 1934713408
        %v1845 = vunpack.c.0.s8 %v1844
        %v1846 = vlaneseq
        %v1847 = vshrl.u32 %v1846, 7
        %v1848 = vsub.s32 %v1845, %v1847
        %v1849 = vrot.slane %v1841, %v1848
        %v1851 = vunpack.c.l.s4 1934713408
        %v1852 = vunpack.c.0.s8 %v1851
        %v1853 = vlaneseq
        %v1854 = vshrl.u32 %v1853, 7
        %v1855 = vsub.s32 %v1852, %v1854
        %v1856 = vrot.slane %v1842, %v1855
        %v1857 = vcombine.low %v1801, %v1817
        %v1858 = vcombine.high %v1801, %v1817
        %v1860 = vunpack.c.l.s4 1934713408
        %v1861 = vunpack.c.0.s8 %v1860
        %v1862 = vlaneseq
        %v1863 = vshrl.u32 %v1862, 7
        %v1864 = vsub.s32 %v1861, %v1863
        %v1865 = vrot.slane %v1857, %v1864
        %v1867 = vunpack.c.l.s4 1934713408
        %v1868 = vunpack.c.0.s8 %v1867
        %v1869 = vlaneseq
        %v1870 = vshrl.u32 %v1869, 7
        %v1871 = vsub.s32 %v1868, %v1870
        %v1872 = vrot.slane %v1858, %v1871
        %v1873 = vcombine.low %v1808, %v1824
        %v1874 = vcombine.high %v1808, %v1824
        %v1876 = vunpack.c.l.s4 1934713408
        %v1877 = vunpack.c.0.s8 %v1876
        %v1878 = vlaneseq
        %v1879 = vshrl.u32 %v1878, 7
        %v1880 = vsub.s32 %v1877, %v1879
        %v1881 = vrot.slane %v1873, %v1880
        %v1883 = vunpack.c.l.s4 1934713408
        %v1884 = vunpack.c.0.s8 %v1883
        %v1885 = vlaneseq
        %v1886 = vshrl.u32 %v1885, 7
        %v1887 = vsub.s32 %v1884, %v1886
        %v1888 = vrot.slane %v1874, %v1887
        %v1889 = vcombine.low %v1833, %v1865
        %v1890 = vcombine.high %v1833, %v1865
        %v1891 = vcombine.low %v1840, %v1872
        %v1892 = vcombine.high %v1840, %v1872
        %v1893 = vcombine.low %v1849, %v1881
        %v1894 = vcombine.high %v1849, %v1881
        %v1895 = vcombine.low %v1856, %v1888
        %v1896 = vcombine.high %v1856, %v1888
        %v1897 = vcombine.low %v1746, %v1750
        %v1898 = vcombine.high %v1746, %v1750
        %v1900 = vunpack.c.l.s4 1983009808
        %v1901 = vunpack.c.0.s8 %v1900
        %v1902 = vlaneseq
        %v1903 = vshrl.u32 %v1902, 7
        %v1904 = vsub.s32 %v1901, %v1903
        %v1905 = vrot.slane %v1897, %v1904
        %v1907 = vunpack.c.l.s4 1983009808
        %v1908 = vunpack.c.0.s8 %v1907
        %v1909 = vlaneseq
        %v1910 = vshrl.u32 %v1909, 7
        %v1911 = vsub.s32 %v1908, %v1910
        %v1912 = vrot.slane %v1898, %v1911
        %v1913 = vcombine.low %v1748, %v1752
        %v1914 = vcombine.high %v1748, %v1752
        %v1916 = vunpack.c.l.s4 1983009808
        %v1917 = vunpack.c.0.s8 %v1916
        %v1918 = vlaneseq
        %v1919 = vshrl.u32 %v1918, 7
        %v1920 = vsub.s32 %v1917, %v1919
        %v1921 = vrot.slane %v1913, %v1920
        %v1923 = vunpack.c.l.s4 1983009808
        %v1924 = vunpack.c.0.s8 %v1923
        %v1925 = vlaneseq
        %v1926 = vshrl.u32 %v1925, 7
        %v1927 = vsub.s32 %v1924, %v1926
        %v1928 = vrot.slane %v1914, %v1927
        %v1929 = vcombine.low %v1754, %v1758
        %v1930 = vcombine.high %v1754, %v1758
        %v1932 = vunpack.c.l.s4 1983009808
        %v1933 = vunpack.c.0.s8 %v1932
        %v1934 = vlaneseq
        %v1935 = vshrl.u32 %v1934, 7
        %v1936 = vsub.s32 %v1933, %v1935
        %v1937 = vrot.slane %v1929, %v1936
        %v1939 = vunpack.c.l.s4 1983009808
        %v1940 = vunpack.c.0.s8 %v1939
        %v1941 = vlaneseq
        %v1942 = vshrl.u32 %v1941, 7
        %v1943 = vsub.s32 %v1940, %v1942
        %v1944 = vrot.slane %v1930, %v1943
        %v1945 = vcombine.low %v1756, %v1760
        %v1946 = vcombine.high %v1756, %v1760
        %v1948 = vunpack.c.l.s4 1983009808
        %v1949 = vunpack.c.0.s8 %v1948
        %v1950 = vlaneseq
        %v1951 = vshrl.u32 %v1950, 7
        %v1952 = vsub.s32 %v1949, %v1951
        %v1953 = vrot.slane %v1945, %v1952
        %v1955 = vunpack.c.l.s4 1983009808
        %v1956 = vunpack.c.0.s8 %v1955
        %v1957 = vlaneseq
        %v1958 = vshrl.u32 %v1957, 7
        %v1959 = vsub.s32 %v1956, %v1958
        %v1960 = vrot.slane %v1946, %v1959
        %v1961 = vcombine.low %v1905, %v1921
        %v1962 = vcombine.high %v1905, %v1921
        %v1964 = vunpack.c.l.s4 1934713408
        %v1965 = vunpack.c.0.s8 %v1964
        %v1966 = vlaneseq
        %v1967 = vshrl.u32 %v1966, 7
        %v1968 = vsub.s32 %v1965, %v1967
        %v1969 = vrot.slane %v1961, %v1968
        %v1971 = vunpack.c.l.s4 1934713408
        %v1972 = vunpack.c.0.s8 %v1971
        %v1973 = vlaneseq
        %v1974 = vshrl.u32 %v1973, 7
        %v1975 = vsub.s32 %v1972, %v1974
        %v1976 = vrot.slane %v1962, %v1975
        %v1977 = vcombine.low %v1912, %v1928
        %v1978 = vcombine.high %v1912, %v1928
        %v1980 = vunpack.c.l.s4 1934713408
        %v1981 = vunpack.c.0.s8 %v1980
        %v1982 = vlaneseq
        %v1983 = vshrl.u32 %v1982, 7
        %v1984 = vsub.s32 %v1981, %v1983
        %v1985 = vrot.slane %v1977, %v1984
        %v1987 = vunpack.c.l.s4 1934713408
        %v1988 = vunpack.c.0.s8 %v1987
        %v1989 = vlaneseq
        %v1990 = vshrl.u32 %v1989, 7
        %v1991 = vsub.s32 %v1988, %v1990
        %v1992 = vrot.slane %v1978, %v1991
        %v1993 = vcombine.low %v1937, %v1953
        %v1994 = vcombine.high %v1937, %v1953
        %v1996 = vunpack.c.l.s4 1934713408
        %v1997 = vunpack.c.0.s8 %v1996
        %v1998 = vlaneseq
        %v1999 = vshrl.u32 %v1998, 7
        %v2000 = vsub.s32 %v1997, %v1999
        %v2001 = vrot.slane %v1993, %v2000
        %v2003 = vunpack.c.l.s4 1934713408
        %v2004 = vunpack.c.0.s8 %v2003
        %v2005 = vlaneseq
        %v2006 = vshrl.u32 %v2005, 7
        %v2007 = vsub.s32 %v2004, %v2006
        %v2008 = vrot.slane %v1994, %v2007
        %v2009 = vcombine.low %v1944, %v1960
        %v2010 = vcombine.high %v1944, %v1960
        %v2012 = vunpack.c.l.s4 1934713408
        %v2013 = vunpack.c.0.s8 %v2012
        %v2014 = vlaneseq
        %v2015 = vshrl.u32 %v2014, 7
        %v2016 = vsub.s32 %v2013, %v2015
        %v2017 = vrot.slane %v2009, %v2016
        %v2019 = vunpack.c.l.s4 1934713408
        %v2020 = vunpack.c.0.s8 %v2019
        %v2021 = vlaneseq
        %v2022 = vshrl.u32 %v2021, 7
        %v2023 = vsub.s32 %v2020, %v2022
        %v2024 = vrot.slane %v2010, %v2023
        %v2025 = vcombine.low %v1969, %v2001
        %v2026 = vcombine.high %v1969, %v2001
        %v2027 = vcombine.low %v1976, %v2008
        %v2028 = vcombine.high %v1976, %v2008
        %v2029 = vcombine.low %v1985, %v2017
        %v2030 = vcombine.high %v1985, %v2017
        %v2031 = vcombine.low %v1992, %v2024
        %v2032 = vcombine.high %v1992, %v2024
        %2034 = vrot.lane.b32.xlu0 %v1890, 16
        %v2035 = vpop.permute.xlu0 %2034
        %2038 = vrot.lane.b32.xlu0 %v1891, 32
        %v2039 = vpop.permute.xlu0 %2038
        %2042 = vrot.lane.b32.xlu0 %v1892, 48
        %v2043 = vpop.permute.xlu0 %2042
        %2046 = vrot.lane.b32.xlu0 %v1893, 64
        %v2047 = vpop.permute.xlu0 %2046
        %2050 = vrot.lane.b32.xlu0 %v1894, 80
        %v2051 = vpop.permute.xlu0 %2050
        %2054 = vrot.lane.b32.xlu0 %v1895, 96
        %v2055 = vpop.permute.xlu0 %2054
        %2058 = vrot.lane.b32.xlu0 %v1896, 112
        %v2059 = vpop.permute.xlu0 %2058
        %2062 = vrot.lane.b32.xlu0 %v2026, 16
        %v2063 = vpop.permute.xlu0 %2062
        %2066 = vrot.lane.b32.xlu0 %v2027, 32
        %v2067 = vpop.permute.xlu0 %2066
        %2070 = vrot.lane.b32.xlu0 %v2028, 48
        %v2071 = vpop.permute.xlu0 %2070
        %2074 = vrot.lane.b32.xlu0 %v2029, 64
        %v2075 = vpop.permute.xlu0 %2074
        %2078 = vrot.lane.b32.xlu0 %v2030, 80
        %v2079 = vpop.permute.xlu0 %2078
        %2082 = vrot.lane.b32.xlu0 %v2031, 96
        %v2083 = vpop.permute.xlu0 %2082
        %2086 = vrot.lane.b32.xlu0 %v2032, 112
        %v2087 = vpop.permute.xlu0 %2086
        %v2089 = vsel %vm656, %v1889, %v2035
        %vm2090 = vcmask 261120
        %v2091 = vsel %vm2090, %v2089, %v2039
        %vm2092 = vcmask 392192
        %v2093 = vsel %vm2092, %v2091, %v2043
        %vm2094 = vcmask 523264
        %v2095 = vsel %vm2094, %v2093, %v2047
        %vm2096 = vcmask 654336
        %v2097 = vsel %vm2096, %v2095, %v2051
        %vm2098 = vcmask 785408
        %v2099 = vsel %vm2098, %v2097, %v2055
        %vm2100 = vcmask 916480
        %v2101 = vsel %vm2100, %v2099, %v2059
        %v2102 = vsel %vm656, %v2025, %v2063
        %v2103 = vsel %vm2090, %v2102, %v2067
        %v2104 = vsel %vm2092, %v2103, %v2071
        %v2105 = vsel %vm2094, %v2104, %v2075
        %v2106 = vsel %vm2096, %v2105, %v2079
        %v2107 = vsel %vm2098, %v2106, %v2083
        %v2108 = vsel %vm2100, %v2107, %v2087
        %2109 = vst [vmem:[%s302] sm:$0xff] %v2101
        %2110 = vst [vmem:[%s302 + $0x8] sm:$0xff] %v2108
        %s2111 = sand.u32 %s153, 1
        %s2112 = scalar_lea.sflag [#allocation3], %s2111
        %s2113 = sand.u32 %s153, 1
        %s2114 = smul.addr %s2113, 16
        %s2115 = scalar_lea.vmem [#allocation2], %s2114
        // Predicated region
        $region37: #{tpu_custom_call.1} parent=35 // pred_check
          %p2116 = pneg %p163
        $region38: #{tpu_custom_call.1} parent=35 // pred_check_branch
          %2118 = sbr.rel (%p2116) target = $region40
        $region39: #{tpu_custom_call.1} parent=35 // pred_region
          %s2120 = ssub.s32 256, 256
          %2121 = vsyncadd %s2112, %s2120
          %s2122 = smul.addr %s23, 2
          %s2123 = smul.addr %s22, 4
          %s2124 = sadd.s32 %s2122, %s2123
          %s2125 = smul.addr %s2124, 128
          %s2126 = scalar_lea.hbm %s4, %s2125
          %s2128 = sshll.u32 %s2115, 4
          %s2129 = int_to_ptr.vmem [resolvable:$true] %s2128
          %2131 = dma.vmem_to_hbm [thread:$0]  %s2129, 256, %s2126, %s2112
        $region40: #{tpu_custom_call.1} parent=35 // pred_fallthru
          _
      $region36: #{tpu_custom_call.1} parent=5 // pred_fallthru
        _
      %p2132 = scmp.le.s32.totalorder 2, %s13
      // Predicated region
      $region41: #{tpu_custom_call.1} parent=5 // pred_check
        %p2133 = pneg %p2132
      $region42: #{tpu_custom_call.1} parent=5 // pred_check_branch
        %2135 = sbr.rel (%p2133) target = $region44
      $region43: #{tpu_custom_call.1} parent=5 // pred_region
        %s2136 = ssub.s32 %s13, 2
        // Predicated region
        $region45: #{tpu_custom_call.1} parent=43 // pred_check
          %p2137 = pneg %p169
        $region46: #{tpu_custom_call.1} parent=43 // pred_check_branch
          %2139 = sbr.rel (%p2137) target = $region48
        $region47: #{tpu_custom_call.1} parent=43 // pred_region
          %s2140 = sand.u32 %s154, 1
          %s2141 = scalar_lea.sflag [#allocation3], %s2140
          %s2142 = sand.u32 %s154, 1
          %s2143 = smul.addr %s2142, 16
          %s2144 = scalar_lea.vmem [#allocation2], %s2143
          %2145 = dma.done %s2141, 256
        $region48: #{tpu_custom_call.1} parent=43 // pred_fallthru
          _
      $region44: #{tpu_custom_call.1} parent=5 // pred_fallthru
        _
    $region6: #{tpu_custom_call.1} parent=1 // loop_footer
      %s17 = sadd.s32 1, %s13
    $region7: #{tpu_custom_call.1} parent=1 // loop_footer_branch
      %12 = sbr.rel target = $region3
    $region8: #{tpu_custom_call.1} parent=1 // loop_exit
      _
    %2146 = vsyncpa [#allocation3], 1
    %s2147 = scalar_lea.sflag [#allocation3], 1
    %2148 = vsyncpa %s2147, 1

</llo_original>
